<compile_context>
chip_gen: v7x
topology: tpu7x:2x2x1
jax: 0.10.0
libtpu: 0.0.40
codegen_flags: <defaults>
</compile_context>

<pallas_src>
import numpy as np
import jax
import jax.numpy as jnp
from jax import lax
from jax.experimental import pallas as pl
from jax.experimental.pallas import tpu as pltpu


# ----------------------------------------------------------------------------
# Fused kernel: LSTM stack + conv1 -> relu -> conv2 -> softmax(seq) -> bmm
# ----------------------------------------------------------------------------
def _make_fused_kernel(num_layers, T, B, H, C1, C2, K, pad):
    TB = T * B
    PB = pad * B

    def kernel(*refs):
        f32 = jnp.float32
        x_ref = refs[0]
        lstm_refs = refs[1:1 + 3 * num_layers]
        w1_ref, b1_ref, w2_ref, b2_ref = refs[1 + 3 * num_layers:5 + 3 * num_layers]
        out_ref = refs[5 + 3 * num_layers]
        lstm_pad_ref, h1pad_ref = refs[6 + 3 * num_layers:]

        # Zero ONLY the conv-pad rows (body rows are fully overwritten below).
        if PB > 0:
            lstm_pad_ref[0:PB, :] = jnp.zeros((PB, H), f32)
            lstm_pad_ref[PB + TB:PB + TB + PB, :] = jnp.zeros((PB, H), f32)
            h1pad_ref[0:PB, :] = jnp.zeros((PB, C1), f32)
            h1pad_ref[PB + TB:PB + TB + PB, :] = jnp.zeros((PB, C1), f32)

        # ---------------- LSTM stack (all layers resident in VMEM) ----------
        for l in range(num_layers):
            wih_ref = lstm_refs[3 * l + 0]          # (in_dim, 4H)
            whh_ref = lstm_refs[3 * l + 1]          # (H, 4H) packed [i|f|g|o]
            b_ref = lstm_refs[3 * l + 2]            # (1, 4H)

            if l == 0:
                layer_in = x_ref[...].astype(f32)                   # (T*B, E)
            else:
                # Previous layer's output lives in the body rows of the
                # shared scratch (no concat of per-step tiles).
                layer_in = lstm_pad_ref[PB:PB + TB, :]              # (T*B, H)

            # Hoisted input projection: ONE MXU matmul for all timesteps.
            gx = jnp.dot(layer_in, wih_ref[...],
                         preferred_element_type=f32) + b_ref[...]   # (T*B, 4H)
            whh = whh_ref[...]                                       # (H, 4H)

            h = jnp.zeros((B, H), f32)
            c = jnp.zeros((B, H), f32)
            # Fully unrolled static recurrence (T small & static here).
            # TODO(synk): for production T, switch to lax.fori_loop with a
            # modest unroll factor to bound code size / vreg live ranges.
            for t in range(T):
                r = t * B
                # ONE packed recurrence matmul per step (was 4 per-gate dots).
                z = gx[r:r + B, :] + jnp.dot(h, whh,
                                             preferred_element_type=f32)  # (B, 4H)
                sig = jax.nn.sigmoid(z)
                gg = jnp.tanh(z[:, 2 * H:3 * H])
                c = sig[:, H:2 * H] * c + sig[:, 0:H] * gg
                h = sig[:, 3 * H:4 * H] * jnp.tanh(c)
                # TODO(synk): when B < 8, these are masked sub-tile stores;
                # coalesce several timesteps per store (or pad B to 8) at
                # production shapes.  Moot once B >= 8.
                lstm_pad_ref[PB + r:PB + r + B, :] = h

        # TODO(synk): nn.Dropout is the identity here (eval-mode semantics).

        # ---------------- conv1 -> relu -> conv2 (single matmul each) -------
        # Time-major flat layout makes the conv taps uniform across batches:
        # tap k == rows [k*B, k*B + T*B) of the padded scratch.  Concatenating
        # the K taps along lanes (im2col) turns each conv into ONE matmul with
        # a K*Cin contraction instead of K short-contraction matmuls.
        im1 = jnp.concatenate(
            [lstm_pad_ref[k * B:k * B + TB, :] for k in range(K)], axis=1)  # (TB, K*H)
        h1 = jnp.maximum(
            jnp.dot(im1, w1_ref[...], preferred_element_type=f32) + b1_ref[...],
            0.0)                                                     # (TB, C1)
        h1pad_ref[PB:PB + TB, :] = h1

        im2 = jnp.concatenate(
            [h1pad_ref[k * B:k * B + TB, :] for k in range(K)], axis=1)     # (TB, K*C1)
        h2 = jnp.dot(im2, w2_ref[...],
                     preferred_element_type=f32) + b2_ref[...]      # (TB, C2)

        # ---------------- batched masked softmax over sequence + bmm --------
        # Rows ordered r = c*B + b; columns j = t*B + b'.  A row for batch b
        # only attends to columns with b' == b; masked columns are -inf INSIDE
        # the exp (exp(-inf) == 0) so the single block matmul against the
        # full (TB, H) LSTM output is numerically identical to the per-batch
        # softmax + bmm of the reference.
        h2t = h2.T                                                   # (C2, TB)
        h2b = jnp.concatenate(
            [jnp.broadcast_to(h2t[c:c + 1, :], (B, TB)) for c in range(C2)],
            axis=0)                                                  # (C2*B, TB)
        row_b = lax.broadcasted_iota(jnp.int32, (C2 * B, TB), 0) % B
        col_b = lax.broadcasted_iota(jnp.int32, (C2 * B, TB), 1) % B
        masked = jnp.where(row_b == col_b, h2b, -jnp.inf)
        m = jnp.max(masked, axis=-1, keepdims=True)
        e = jnp.exp(masked - m)                                      # masked -> 0
        s = jnp.sum(e, axis=-1, keepdims=True)
        # Exact divide keeps the 2e-4 check vs. the f32 reference;
        # pl.reciprocal(s, approx=True) is the EUP-slot option if tolerated.
        sm = e * (1.0 / s)                                           # (C2*B, TB)

        lstm_flat = lstm_pad_ref[PB:PB + TB, :]                      # (TB, H)
        feat = jnp.dot(sm, lstm_flat, preferred_element_type=f32)    # (C2*B, H)

        # Assemble the flattened (B, C2*H) feature and do ONE contiguous store.
        out_val = jnp.concatenate(
            [feat[c * B:(c + 1) * B, :] for c in range(C2)], axis=1)  # (B, C2*H)
        out_ref[...] = out_val.astype(out_ref.dtype)

    return kernel


def attention_text_embedding(x, kernel_inputs, *, hidden_dim, conv1_out,
                             conv2_out, kernel_size, padding, num_layers):
    """x: (B, T, E) float32; kernel_inputs: pre-packed weights (see __init__)."""
    B, T, E = x.shape
    H, C1, C2, K = hidden_dim, conv1_out, conv2_out, kernel_size

    # Conv output length must equal T for the reference bmm to be valid.
    assert 2 * padding == kernel_size - 1, "conv must preserve sequence length"

    # One transpose of the raw input to time-major; everything downstream
    # stays time-major flat and resident in VMEM inside one fused kernel.
    x_flat = jnp.swapaxes(x, 0, 1).reshape(T * B, E)
    inputs = [x_flat] + list(kernel_inputs)

    vmem = pl.BlockSpec(memory_space=pltpu.MemorySpace.VMEM)
    feat = pl.pallas_call(
        _make_fused_kernel(num_layers, T, B, H, C1, C2, K, padding),
        out_shape=jax.ShapeDtypeStruct((B, C2 * H), jnp.float32),
        in_specs=[vmem] * len(inputs),
        out_specs=vmem,
        scratch_shapes=[
            pltpu.VMEM(((T + 2 * padding) * B, H), jnp.float32),    # padded LSTM out
            pltpu.VMEM(((T + 2 * padding) * B, C1), jnp.float32),   # padded conv1 out
        ],
        # TODO(synk): for production (T, B, H), tile T/B with a grid axis
        # (carry h/c in scratch, "parallel" batch blocks for v7x's two
        # TensorCores), set pltpu.CompilerParams(vmem_limit_bytes=...) for the
        # 64 MiB v7x VMEM, and use bf16 MXU operands on v6e/v7x.  At these toy
        # shapes everything fits comfortably in one invocation.
    )(*inputs)
    return feat


# ----------------------------------------------------------------------------
# TextEmbedding wrapper (only emb_type='attention' is implemented; the other
# emb_types need external vocab/files or are separate modules).
# ----------------------------------------------------------------------------
class TextEmbedding:
    def __init__(self, emb_type, **kwargs):
        if emb_type != 'attention':
            raise NotImplementedError(
                "Only emb_type='attention' (AttentionTextEmbedding) is ported.")
        self.hidden_dim = kwargs['hidden_dim']
        self.embedding_dim = kwargs['embedding_dim']
        self.num_layers = kwargs['num_layers']
        self.conv1_out = kwargs['conv1_out']
        self.conv2_out = kwargs['conv2_out']
        self.kernel_size = kwargs['kernel_size']
        self.padding = kwargs['padding']
        self.text_out_dim = self.hidden_dim * self.conv2_out

        # Deterministic synthetic parameter init (PyTorch-like uniform scales).
        keys = iter(jax.random.split(jax.random.PRNGKey(1234),
                                     4 * self.num_layers + 4))

        def u(k, shape, scale):
            return jax.random.uniform(k, shape, jnp.float32, -scale, scale)

        H, C1, C2, K = (self.hidden_dim, self.conv1_out, self.conv2_out,
                        self.kernel_size)
        lstm_params = []
        for l in range(self.num_layers):
            in_dim = self.embedding_dim if l == 0 else H
            s = 1.0 / np.sqrt(H)
            lstm_params.append((
                u(next(keys), (4 * H, in_dim), s),   # w_ih
                u(next(keys), (4 * H, H), s),        # w_hh
                u(next(keys), (4 * H,), s),          # b_ih
                u(next(keys), (4 * H,), s),          # b_hh
            ))
        s1 = 1.0 / np.sqrt(H * K)
        conv1 = (u(next(keys), (C1, H, K), s1), u(next(keys), (C1,), s1))
        s2 = 1.0 / np.sqrt(C1 * K)
        conv2 = (u(next(keys), (C2, C1, K), s2), u(next(keys), (C2,), s2))
        self.params = {'lstm': lstm_params, 'conv1': conv1, 'conv2': conv2}

        # ---- pre-pack all weights ONCE (no per-forward transposes/stacks) ---
        packed = []
        for l in range(self.num_layers):
            w_ih, w_hh, b_ih, b_hh = lstm_params[l]
            packed.append(jnp.swapaxes(w_ih, 0, 1))                 # (in_dim, 4H)
            packed.append(jnp.swapaxes(w_hh, 0, 1))                 # (H, 4H) packed
            packed.append((b_ih + b_hh).reshape(1, 4 * H))          # (1, 4H)
        w1, b1 = conv1
        w2, b2 = conv2
        # im2col-stacked conv weights: row index = k*Cin + cin.
        packed.append(jnp.transpose(w1, (2, 1, 0)).reshape(K * H, C1))
        packed.append(b1.reshape(1, C1))
        packed.append(jnp.transpose(w2, (2, 1, 0)).reshape(K * C1, C2))
        packed.append(b2.reshape(1, C2))
        self._kernel_inputs = tuple(packed)

    def __call__(self, x):
        return attention_text_embedding(
            x, self._kernel_inputs,
            hidden_dim=self.hidden_dim, conv1_out=self.conv1_out,
            conv2_out=self.conv2_out, kernel_size=self.kernel_size,
            padding=self.padding, num_layers=self.num_layers)


# ----------------------------------------------------------------------------
# Pure-JAX reference (for correctness check only)
# ----------------------------------------------------------------------------
def _reference_forward(x, params, *, padding, num_layers):
    B, T, _ = x.shape
    h = x
    for l in range(num_layers):
        w_ih, w_hh, b_ih, b_hh = params['lstm'][l]
        Hd = w_hh.shape[1]

        def step(carry, xt, w_ih=w_ih, w_hh=w_hh, b_ih=b_ih, b_hh=b_hh, Hd=Hd):
            hh, cc = carry
            g = xt @ w_ih.T + hh @ w_hh.T + b_ih + b_hh
            i, f, gg, o = jnp.split(g, 4, axis=-1)
            cc = jax.nn.sigmoid(f) * cc + jax.nn.sigmoid(i) * jnp.tanh(gg)
            hh = jax.nn.sigmoid(o) * jnp.tanh(cc)
            return (hh, cc), hh

        init = (jnp.zeros((B, Hd), jnp.float32), jnp.zeros((B, Hd), jnp.float32))
        _, hs = lax.scan(step, init, jnp.swapaxes(h, 0, 1))
        h = jnp.swapaxes(hs, 0, 1)
    lstm_out = h

    def conv1d(inp, w, b, pad):
        Bn, S, _ = inp.shape
        _, _, K = w.shape
        xp = jnp.pad(inp, ((0, 0), (pad, pad), (0, 0)))
        out = jnp.broadcast_to(b, (Bn, S, w.shape[0])).astype(jnp.float32)
        for k in range(K):
            out = out + jnp.einsum('bsc,oc->bso', xp[:, k:k + S, :], w[:, :, k])
        return out

    w1, b1 = params['conv1']
    w2, b2 = params['conv2']
    c1 = jnp.maximum(conv1d(lstm_out, w1, b1, padding), 0.0)
    c2 = conv1d(c1, w2, b2, padding)
    sm = jax.nn.softmax(c2, axis=1)                     # softmax over sequence
    feat = jnp.einsum('bsc,bsh->bch', sm, lstm_out)
    return feat.reshape(B, -1)


if __name__ == "__main__":
    B, T, E, H = 2, 8, 32, 32
    C1, C2, K, PAD = 64, 2, 3, 1

    emb = TextEmbedding('attention', hidden_dim=H, embedding_dim=E,
                        num_layers=1, dropout=0.0,
                        conv1_out=C1, conv2_out=C2, kernel_size=K, padding=PAD)

    x = jax.random.normal(jax.random.PRNGKey(0), (B, T, E), jnp.float32)

    fwd = jax.jit(emb.__call__)
    out = jax.block_until_ready(fwd(x))
    assert out.shape == (B, emb.text_out_dim)

    ref = _reference_forward(x, emb.params, padding=PAD, num_layers=1)
    np.testing.assert_allclose(np.asarray(out), np.asarray(ref),
                               rtol=2e-4, atol=2e-4)
    print("KERNEL_OK")
</pallas_src>

<mosaic_0001>
module attributes {stable_mosaic.version = 11 : i64} {
  func.func @kernel(%arg0: memref<16x32xf32, #tpu.memory_space<vmem>>, %arg1: memref<32x128xf32, #tpu.memory_space<vmem>>, %arg2: memref<32x128xf32, #tpu.memory_space<vmem>>, %arg3: memref<1x128xf32, #tpu.memory_space<vmem>>, %arg4: memref<96x64xf32, #tpu.memory_space<vmem>>, %arg5: memref<1x64xf32, #tpu.memory_space<vmem>>, %arg6: memref<192x2xf32, #tpu.memory_space<vmem>>, %arg7: memref<1x2xf32, #tpu.memory_space<vmem>>, %arg8: memref<2x64xf32, #tpu.memory_space<vmem>>, %arg9: memref<20x32xf32, #tpu.memory_space<vmem>>, %arg10: memref<20x64xf32, #tpu.memory_space<vmem>>) attributes {dimension_semantics = [], scalar_prefetch = 0 : i64, scratch_operands = 2 : i64, tpu.core_type = #tpu.core_type<tc>} {
    %cst = arith.constant 0.000000e+00 : f32
    %0 = vector.broadcast %cst : f32 to vector<2x32xf32>
    %c0 = arith.constant 0 : index
    %c0_0 = arith.constant 0 : index
    %1 = vector.load %arg9[%c0, %c0_0] : memref<20x32xf32, #tpu.memory_space<vmem>>, vector<2x32xf32>
    tpu.vector_store %arg9[%c0, %c0_0], %0 {strides = array<i32>} : memref<20x32xf32, #tpu.memory_space<vmem>>, vector<2x32xf32>,
    %cst_1 = arith.constant 0.000000e+00 : f32
    %2 = vector.broadcast %cst_1 : f32 to vector<2x32xf32>
    %c18 = arith.constant 18 : index
    %c0_2 = arith.constant 0 : index
    %3 = vector.load %arg9[%c18, %c0_2] : memref<20x32xf32, #tpu.memory_space<vmem>>, vector<2x32xf32>
    tpu.vector_store %arg9[%c18, %c0_2], %2 {strides = array<i32>} : memref<20x32xf32, #tpu.memory_space<vmem>>, vector<2x32xf32>,
    %cst_3 = arith.constant 0.000000e+00 : f32
    %4 = vector.broadcast %cst_3 : f32 to vector<2x64xf32>
    %c0_4 = arith.constant 0 : index
    %c0_5 = arith.constant 0 : index
    %5 = vector.load %arg10[%c0_4, %c0_5] : memref<20x64xf32, #tpu.memory_space<vmem>>, vector<2x64xf32>
    tpu.vector_store %arg10[%c0_4, %c0_5], %4 {strides = array<i32>} : memref<20x64xf32, #tpu.memory_space<vmem>>, vector<2x64xf32>,
    %cst_6 = arith.constant 0.000000e+00 : f32
    %6 = vector.broadcast %cst_6 : f32 to vector<2x64xf32>
    %c18_7 = arith.constant 18 : index
    %c0_8 = arith.constant 0 : index
    %7 = vector.load %arg10[%c18_7, %c0_8] : memref<20x64xf32, #tpu.memory_space<vmem>>, vector<2x64xf32>
    tpu.vector_store %arg10[%c18_7, %c0_8], %6 {strides = array<i32>} : memref<20x64xf32, #tpu.memory_space<vmem>>, vector<2x64xf32>,
    %c0_9 = arith.constant 0 : index
    %c0_10 = arith.constant 0 : index
    %8 = vector.load %arg0[%c0_9, %c0_10] : memref<16x32xf32, #tpu.memory_space<vmem>>, vector<16x32xf32>
    %c0_11 = arith.constant 0 : index
    %c0_12 = arith.constant 0 : index
    %9 = vector.load %arg1[%c0_11, %c0_12] : memref<32x128xf32, #tpu.memory_space<vmem>>, vector<32x128xf32>
    %cst_13 = arith.constant dense<0.000000e+00> : vector<16x128xf32>
    %10 = tpu.matmul %8, %9, %cst_13 {dimension_numbers = #tpu.dot_dimension_numbers<[1], [0], [0], [1], [0, 0, 1, 1], [], []>} : vector<16x32xf32>, vector<32x128xf32>, vector<16x128xf32> -> vector<16x128xf32>
    %c0_14 = arith.constant 0 : index
    %c0_15 = arith.constant 0 : index
    %11 = vector.load %arg3[%c0_14, %c0_15] : memref<1x128xf32, #tpu.memory_space<vmem>>, vector<1x128xf32>
    %12 = vector.broadcast %11 : vector<1x128xf32> to vector<16x128xf32>
    %13 = arith.addf %10, %12 : vector<16x128xf32>
    %c0_16 = arith.constant 0 : index
    %c0_17 = arith.constant 0 : index
    %14 = vector.load %arg2[%c0_16, %c0_17] : memref<32x128xf32, #tpu.memory_space<vmem>>, vector<32x128xf32>
    %cst_18 = arith.constant 0.000000e+00 : f32
    %15 = vector.broadcast %cst_18 : f32 to vector<2x32xf32>
    %cst_19 = arith.constant 0.000000e+00 : f32
    %16 = vector.broadcast %cst_19 : f32 to vector<2x32xf32>
    %17 = vector.extract_strided_slice %13 {offsets = [0, 0], sizes = [2, 128], strides = [1, 1]} : vector<16x128xf32> to vector<2x128xf32>
    %cst_20 = arith.constant dense<0.000000e+00> : vector<2x128xf32>
    %18 = tpu.matmul %15, %14, %cst_20 {dimension_numbers = #tpu.dot_dimension_numbers<[1], [0], [0], [1], [0, 0, 1, 1], [], []>} : vector<2x32xf32>, vector<32x128xf32>, vector<2x128xf32> -> vector<2x128xf32>
    %19 = arith.addf %17, %18 : vector<2x128xf32>
    %20 = arith.negf %19 : vector<2x128xf32>
    %21 = math.exp %20 : vector<2x128xf32>
    %cst_21 = arith.constant 1.000000e+00 : f32
    %22 = vector.broadcast %cst_21 : f32 to vector<2x128xf32>
    %23 = arith.addf %22, %21 : vector<2x128xf32>
    %24 = arith.divf %22, %23 : vector<2x128xf32>
    %25 = vector.extract_strided_slice %19 {offsets = [0, 64], sizes = [2, 32], strides = [1, 1]} : vector<2x128xf32> to vector<2x32xf32>
    %26 = math.tanh %25 : vector<2x32xf32>
    %27 = vector.extract_strided_slice %24 {offsets = [0, 32], sizes = [2, 32], strides = [1, 1]} : vector<2x128xf32> to vector<2x32xf32>
    %28 = arith.mulf %27, %16 : vector<2x32xf32>
    %29 = vector.extract_strided_slice %24 {offsets = [0, 0], sizes = [2, 32], strides = [1, 1]} : vector<2x128xf32> to vector<2x32xf32>
    %30 = arith.mulf %29, %26 : vector<2x32xf32>
    %31 = arith.addf %28, %30 : vector<2x32xf32>
    %32 = vector.extract_strided_slice %24 {offsets = [0, 96], sizes = [2, 32], strides = [1, 1]} : vector<2x128xf32> to vector<2x32xf32>
    %33 = math.tanh %31 : vector<2x32xf32>
    %34 = arith.mulf %32, %33 : vector<2x32xf32>
    %c2 = arith.constant 2 : index
    %c0_22 = arith.constant 0 : index
    %35 = vector.load %arg9[%c2, %c0_22] : memref<20x32xf32, #tpu.memory_space<vmem>>, vector<2x32xf32>
    tpu.vector_store %arg9[%c2, %c0_22], %34 {strides = array<i32>} : memref<20x32xf32, #tpu.memory_space<vmem>>, vector<2x32xf32>,
    %36 = vector.extract_strided_slice %13 {offsets = [2, 0], sizes = [2, 128], strides = [1, 1]} : vector<16x128xf32> to vector<2x128xf32>
    %cst_23 = arith.constant dense<0.000000e+00> : vector<2x128xf32>
    %37 = tpu.matmul %34, %14, %cst_23 {dimension_numbers = #tpu.dot_dimension_numbers<[1], [0], [0], [1], [0, 0, 1, 1], [], []>} : vector<2x32xf32>, vector<32x128xf32>, vector<2x128xf32> -> vector<2x128xf32>
    %38 = arith.addf %36, %37 : vector<2x128xf32>
    %39 = arith.negf %38 : vector<2x128xf32>
    %40 = math.exp %39 : vector<2x128xf32>
    %cst_24 = arith.constant 1.000000e+00 : f32
    %41 = vector.broadcast %cst_24 : f32 to vector<2x128xf32>
    %42 = arith.addf %41, %40 : vector<2x128xf32>
    %43 = arith.divf %41, %42 : vector<2x128xf32>
    %44 = vector.extract_strided_slice %38 {offsets = [0, 64], sizes = [2, 32], strides = [1, 1]} : vector<2x128xf32> to vector<2x32xf32>
    %45 = math.tanh %44 : vector<2x32xf32>
    %46 = vector.extract_strided_slice %43 {offsets = [0, 32], sizes = [2, 32], strides = [1, 1]} : vector<2x128xf32> to vector<2x32xf32>
    %47 = arith.mulf %46, %31 : vector<2x32xf32>
    %48 = vector.extract_strided_slice %43 {offsets = [0, 0], sizes = [2, 32], strides = [1, 1]} : vector<2x128xf32> to vector<2x32xf32>
    %49 = arith.mulf %48, %45 : vector<2x32xf32>
    %50 = arith.addf %47, %49 : vector<2x32xf32>
    %51 = vector.extract_strided_slice %43 {offsets = [0, 96], sizes = [2, 32], strides = [1, 1]} : vector<2x128xf32> to vector<2x32xf32>
    %52 = math.tanh %50 : vector<2x32xf32>
    %53 = arith.mulf %51, %52 : vector<2x32xf32>
    %c4 = arith.constant 4 : index
    %c0_25 = arith.constant 0 : index
    %54 = vector.load %arg9[%c4, %c0_25] : memref<20x32xf32, #tpu.memory_space<vmem>>, vector<2x32xf32>
    tpu.vector_store %arg9[%c4, %c0_25], %53 {strides = array<i32>} : memref<20x32xf32, #tpu.memory_space<vmem>>, vector<2x32xf32>,
    %55 = vector.extract_strided_slice %13 {offsets = [4, 0], sizes = [2, 128], strides = [1, 1]} : vector<16x128xf32> to vector<2x128xf32>
    %cst_26 = arith.constant dense<0.000000e+00> : vector<2x128xf32>
    %56 = tpu.matmul %53, %14, %cst_26 {dimension_numbers = #tpu.dot_dimension_numbers<[1], [0], [0], [1], [0, 0, 1, 1], [], []>} : vector<2x32xf32>, vector<32x128xf32>, vector<2x128xf32> -> vector<2x128xf32>
    %57 = arith.addf %55, %56 : vector<2x128xf32>
    %58 = arith.negf %57 : vector<2x128xf32>
    %59 = math.exp %58 : vector<2x128xf32>
    %cst_27 = arith.constant 1.000000e+00 : f32
    %60 = vector.broadcast %cst_27 : f32 to vector<2x128xf32>
    %61 = arith.addf %60, %59 : vector<2x128xf32>
    %62 = arith.divf %60, %61 : vector<2x128xf32>
    %63 = vector.extract_strided_slice %57 {offsets = [0, 64], sizes = [2, 32], strides = [1, 1]} : vector<2x128xf32> to vector<2x32xf32>
    %64 = math.tanh %63 : vector<2x32xf32>
    %65 = vector.extract_strided_slice %62 {offsets = [0, 32], sizes = [2, 32], strides = [1, 1]} : vector<2x128xf32> to vector<2x32xf32>
    %66 = arith.mulf %65, %50 : vector<2x32xf32>
    %67 = vector.extract_strided_slice %62 {offsets = [0, 0], sizes = [2, 32], strides = [1, 1]} : vector<2x128xf32> to vector<2x32xf32>
    %68 = arith.mulf %67, %64 : vector<2x32xf32>
    %69 = arith.addf %66, %68 : vector<2x32xf32>
    %70 = vector.extract_strided_slice %62 {offsets = [0, 96], sizes = [2, 32], strides = [1, 1]} : vector<2x128xf32> to vector<2x32xf32>
    %71 = math.tanh %69 : vector<2x32xf32>
    %72 = arith.mulf %70, %71 : vector<2x32xf32>
    %c6 = arith.constant 6 : index
    %c0_28 = arith.constant 0 : index
    %73 = vector.load %arg9[%c6, %c0_28] : memref<20x32xf32, #tpu.memory_space<vmem>>, vector<2x32xf32>
    tpu.vector_store %arg9[%c6, %c0_28], %72 {strides = array<i32>} : memref<20x32xf32, #tpu.memory_space<vmem>>, vector<2x32xf32>,
    %74 = vector.extract_strided_slice %13 {offsets = [6, 0], sizes = [2, 128], strides = [1, 1]} : vector<16x128xf32> to vector<2x128xf32>
    %cst_29 = arith.constant dense<0.000000e+00> : vector<2x128xf32>
    %75 = tpu.matmul %72, %14, %cst_29 {dimension_numbers = #tpu.dot_dimension_numbers<[1], [0], [0], [1], [0, 0, 1, 1], [], []>} : vector<2x32xf32>, vector<32x128xf32>, vector<2x128xf32> -> vector<2x128xf32>
    %76 = arith.addf %74, %75 : vector<2x128xf32>
    %77 = arith.negf %76 : vector<2x128xf32>
    %78 = math.exp %77 : vector<2x128xf32>
    %cst_30 = arith.constant 1.000000e+00 : f32
    %79 = vector.broadcast %cst_30 : f32 to vector<2x128xf32>
    %80 = arith.addf %79, %78 : vector<2x128xf32>
    %81 = arith.divf %79, %80 : vector<2x128xf32>
    %82 = vector.extract_strided_slice %76 {offsets = [0, 64], sizes = [2, 32], strides = [1, 1]} : vector<2x128xf32> to vector<2x32xf32>
    %83 = math.tanh %82 : vector<2x32xf32>
    %84 = vector.extract_strided_slice %81 {offsets = [0, 32], sizes = [2, 32], strides = [1, 1]} : vector<2x128xf32> to vector<2x32xf32>
    %85 = arith.mulf %84, %69 : vector<2x32xf32>
    %86 = vector.extract_strided_slice %81 {offsets = [0, 0], sizes = [2, 32], strides = [1, 1]} : vector<2x128xf32> to vector<2x32xf32>
    %87 = arith.mulf %86, %83 : vector<2x32xf32>
    %88 = arith.addf %85, %87 : vector<2x32xf32>
    %89 = vector.extract_strided_slice %81 {offsets = [0, 96], sizes = [2, 32], strides = [1, 1]} : vector<2x128xf32> to vector<2x32xf32>
    %90 = math.tanh %88 : vector<2x32xf32>
    %91 = arith.mulf %89, %90 : vector<2x32xf32>
    %c8 = arith.constant 8 : index
    %c0_31 = arith.constant 0 : index
    %92 = vector.load %arg9[%c8, %c0_31] : memref<20x32xf32, #tpu.memory_space<vmem>>, vector<2x32xf32>
    tpu.vector_store %arg9[%c8, %c0_31], %91 {strides = array<i32>} : memref<20x32xf32, #tpu.memory_space<vmem>>, vector<2x32xf32>,
    %93 = vector.extract_strided_slice %13 {offsets = [8, 0], sizes = [2, 128], strides = [1, 1]} : vector<16x128xf32> to vector<2x128xf32>
    %cst_32 = arith.constant dense<0.000000e+00> : vector<2x128xf32>
    %94 = tpu.matmul %91, %14, %cst_32 {dimension_numbers = #tpu.dot_dimension_numbers<[1], [0], [0], [1], [0, 0, 1, 1], [], []>} : vector<2x32xf32>, vector<32x128xf32>, vector<2x128xf32> -> vector<2x128xf32>
    %95 = arith.addf %93, %94 : vector<2x128xf32>
    %96 = arith.negf %95 : vector<2x128xf32>
    %97 = math.exp %96 : vector<2x128xf32>
    %cst_33 = arith.constant 1.000000e+00 : f32
    %98 = vector.broadcast %cst_33 : f32 to vector<2x128xf32>
    %99 = arith.addf %98, %97 : vector<2x128xf32>
    %100 = arith.divf %98, %99 : vector<2x128xf32>
    %101 = vector.extract_strided_slice %95 {offsets = [0, 64], sizes = [2, 32], strides = [1, 1]} : vector<2x128xf32> to vector<2x32xf32>
    %102 = math.tanh %101 : vector<2x32xf32>
    %103 = vector.extract_strided_slice %100 {offsets = [0, 32], sizes = [2, 32], strides = [1, 1]} : vector<2x128xf32> to vector<2x32xf32>
    %104 = arith.mulf %103, %88 : vector<2x32xf32>
    %105 = vector.extract_strided_slice %100 {offsets = [0, 0], sizes = [2, 32], strides = [1, 1]} : vector<2x128xf32> to vector<2x32xf32>
    %106 = arith.mulf %105, %102 : vector<2x32xf32>
    %107 = arith.addf %104, %106 : vector<2x32xf32>
    %108 = vector.extract_strided_slice %100 {offsets = [0, 96], sizes = [2, 32], strides = [1, 1]} : vector<2x128xf32> to vector<2x32xf32>
    %109 = math.tanh %107 : vector<2x32xf32>
    %110 = arith.mulf %108, %109 : vector<2x32xf32>
    %c10 = arith.constant 10 : index
    %c0_34 = arith.constant 0 : index
    %111 = vector.load %arg9[%c10, %c0_34] : memref<20x32xf32, #tpu.memory_space<vmem>>, vector<2x32xf32>
    tpu.vector_store %arg9[%c10, %c0_34], %110 {strides = array<i32>} : memref<20x32xf32, #tpu.memory_space<vmem>>, vector<2x32xf32>,
    %112 = vector.extract_strided_slice %13 {offsets = [10, 0], sizes = [2, 128], strides = [1, 1]} : vector<16x128xf32> to vector<2x128xf32>
    %cst_35 = arith.constant dense<0.000000e+00> : vector<2x128xf32>
    %113 = tpu.matmul %110, %14, %cst_35 {dimension_numbers = #tpu.dot_dimension_numbers<[1], [0], [0], [1], [0, 0, 1, 1], [], []>} : vector<2x32xf32>, vector<32x128xf32>, vector<2x128xf32> -> vector<2x128xf32>
    %114 = arith.addf %112, %113 : vector<2x128xf32>
    %115 = arith.negf %114 : vector<2x128xf32>
    %116 = math.exp %115 : vector<2x128xf32>
    %cst_36 = arith.constant 1.000000e+00 : f32
    %117 = vector.broadcast %cst_36 : f32 to vector<2x128xf32>
    %118 = arith.addf %117, %116 : vector<2x128xf32>
    %119 = arith.divf %117, %118 : vector<2x128xf32>
    %120 = vector.extract_strided_slice %114 {offsets = [0, 64], sizes = [2, 32], strides = [1, 1]} : vector<2x128xf32> to vector<2x32xf32>
    %121 = math.tanh %120 : vector<2x32xf32>
    %122 = vector.extract_strided_slice %119 {offsets = [0, 32], sizes = [2, 32], strides = [1, 1]} : vector<2x128xf32> to vector<2x32xf32>
    %123 = arith.mulf %122, %107 : vector<2x32xf32>
    %124 = vector.extract_strided_slice %119 {offsets = [0, 0], sizes = [2, 32], strides = [1, 1]} : vector<2x128xf32> to vector<2x32xf32>
    %125 = arith.mulf %124, %121 : vector<2x32xf32>
    %126 = arith.addf %123, %125 : vector<2x32xf32>
    %127 = vector.extract_strided_slice %119 {offsets = [0, 96], sizes = [2, 32], strides = [1, 1]} : vector<2x128xf32> to vector<2x32xf32>
    %128 = math.tanh %126 : vector<2x32xf32>
    %129 = arith.mulf %127, %128 : vector<2x32xf32>
    %c12 = arith.constant 12 : index
    %c0_37 = arith.constant 0 : index
    %130 = vector.load %arg9[%c12, %c0_37] : memref<20x32xf32, #tpu.memory_space<vmem>>, vector<2x32xf32>
    tpu.vector_store %arg9[%c12, %c0_37], %129 {strides = array<i32>} : memref<20x32xf32, #tpu.memory_space<vmem>>, vector<2x32xf32>,
    %131 = vector.extract_strided_slice %13 {offsets = [12, 0], sizes = [2, 128], strides = [1, 1]} : vector<16x128xf32> to vector<2x128xf32>
    %cst_38 = arith.constant dense<0.000000e+00> : vector<2x128xf32>
    %132 = tpu.matmul %129, %14, %cst_38 {dimension_numbers = #tpu.dot_dimension_numbers<[1], [0], [0], [1], [0, 0, 1, 1], [], []>} : vector<2x32xf32>, vector<32x128xf32>, vector<2x128xf32> -> vector<2x128xf32>
    %133 = arith.addf %131, %132 : vector<2x128xf32>
    %134 = arith.negf %133 : vector<2x128xf32>
    %135 = math.exp %134 : vector<2x128xf32>
    %cst_39 = arith.constant 1.000000e+00 : f32
    %136 = vector.broadcast %cst_39 : f32 to vector<2x128xf32>
    %137 = arith.addf %136, %135 : vector<2x128xf32>
    %138 = arith.divf %136, %137 : vector<2x128xf32>
    %139 = vector.extract_strided_slice %133 {offsets = [0, 64], sizes = [2, 32], strides = [1, 1]} : vector<2x128xf32> to vector<2x32xf32>
    %140 = math.tanh %139 : vector<2x32xf32>
    %141 = vector.extract_strided_slice %138 {offsets = [0, 32], sizes = [2, 32], strides = [1, 1]} : vector<2x128xf32> to vector<2x32xf32>
    %142 = arith.mulf %141, %126 : vector<2x32xf32>
    %143 = vector.extract_strided_slice %138 {offsets = [0, 0], sizes = [2, 32], strides = [1, 1]} : vector<2x128xf32> to vector<2x32xf32>
    %144 = arith.mulf %143, %140 : vector<2x32xf32>
    %145 = arith.addf %142, %144 : vector<2x32xf32>
    %146 = vector.extract_strided_slice %138 {offsets = [0, 96], sizes = [2, 32], strides = [1, 1]} : vector<2x128xf32> to vector<2x32xf32>
    %147 = math.tanh %145 : vector<2x32xf32>
    %148 = arith.mulf %146, %147 : vector<2x32xf32>
    %c14 = arith.constant 14 : index
    %c0_40 = arith.constant 0 : index
    %149 = vector.load %arg9[%c14, %c0_40] : memref<20x32xf32, #tpu.memory_space<vmem>>, vector<2x32xf32>
    tpu.vector_store %arg9[%c14, %c0_40], %148 {strides = array<i32>} : memref<20x32xf32, #tpu.memory_space<vmem>>, vector<2x32xf32>,
    %150 = vector.extract_strided_slice %13 {offsets = [14, 0], sizes = [2, 128], strides = [1, 1]} : vector<16x128xf32> to vector<2x128xf32>
    %cst_41 = arith.constant dense<0.000000e+00> : vector<2x128xf32>
    %151 = tpu.matmul %148, %14, %cst_41 {dimension_numbers = #tpu.dot_dimension_numbers<[1], [0], [0], [1], [0, 0, 1, 1], [], []>} : vector<2x32xf32>, vector<32x128xf32>, vector<2x128xf32> -> vector<2x128xf32>
    %152 = arith.addf %150, %151 : vector<2x128xf32>
    %153 = arith.negf %152 : vector<2x128xf32>
    %154 = math.exp %153 : vector<2x128xf32>
    %cst_42 = arith.constant 1.000000e+00 : f32
    %155 = vector.broadcast %cst_42 : f32 to vector<2x128xf32>
    %156 = arith.addf %155, %154 : vector<2x128xf32>
    %157 = arith.divf %155, %156 : vector<2x128xf32>
    %158 = vector.extract_strided_slice %152 {offsets = [0, 64], sizes = [2, 32], strides = [1, 1]} : vector<2x128xf32> to vector<2x32xf32>
    %159 = math.tanh %158 : vector<2x32xf32>
    %160 = vector.extract_strided_slice %157 {offsets = [0, 32], sizes = [2, 32], strides = [1, 1]} : vector<2x128xf32> to vector<2x32xf32>
    %161 = arith.mulf %160, %145 : vector<2x32xf32>
    %162 = vector.extract_strided_slice %157 {offsets = [0, 0], sizes = [2, 32], strides = [1, 1]} : vector<2x128xf32> to vector<2x32xf32>
    %163 = arith.mulf %162, %159 : vector<2x32xf32>
    %164 = arith.addf %161, %163 : vector<2x32xf32>
    %165 = vector.extract_strided_slice %157 {offsets = [0, 96], sizes = [2, 32], strides = [1, 1]} : vector<2x128xf32> to vector<2x32xf32>
    %166 = math.tanh %164 : vector<2x32xf32>
    %167 = arith.mulf %165, %166 : vector<2x32xf32>
    %c16 = arith.constant 16 : index
    %c0_43 = arith.constant 0 : index
    %168 = vector.load %arg9[%c16, %c0_43] : memref<20x32xf32, #tpu.memory_space<vmem>>, vector<2x32xf32>
    tpu.vector_store %arg9[%c16, %c0_43], %167 {strides = array<i32>} : memref<20x32xf32, #tpu.memory_space<vmem>>, vector<2x32xf32>,
    %c0_44 = arith.constant 0 : index
    %c0_45 = arith.constant 0 : index
    %169 = vector.load %arg9[%c0_44, %c0_45] : memref<20x32xf32, #tpu.memory_space<vmem>>, vector<16x32xf32>
    %c2_46 = arith.constant 2 : index
    %c0_47 = arith.constant 0 : index
    %170 = vector.load %arg9[%c2_46, %c0_47] : memref<20x32xf32, #tpu.memory_space<vmem>>, vector<16x32xf32>
    %c4_48 = arith.constant 4 : index
    %c0_49 = arith.constant 0 : index
    %171 = vector.load %arg9[%c4_48, %c0_49] : memref<20x32xf32, #tpu.memory_space<vmem>>, vector<16x32xf32>
    %172 = tpu.concatenate %169, %170, %171 in 1 : vector<16x32xf32>, vector<16x32xf32>, vector<16x32xf32> -> vector<16x96xf32>
    %c0_50 = arith.constant 0 : index
    %c0_51 = arith.constant 0 : index
    %173 = vector.load %arg4[%c0_50, %c0_51] : memref<96x64xf32, #tpu.memory_space<vmem>>, vector<96x64xf32>
    %cst_52 = arith.constant dense<0.000000e+00> : vector<16x64xf32>
    %174 = tpu.matmul %172, %173, %cst_52 {dimension_numbers = #tpu.dot_dimension_numbers<[1], [0], [0], [1], [0, 0, 1, 1], [], []>} : vector<16x96xf32>, vector<96x64xf32>, vector<16x64xf32> -> vector<16x64xf32>
    %c0_53 = arith.constant 0 : index
    %c0_54 = arith.constant 0 : index
    %175 = vector.load %arg5[%c0_53, %c0_54] : memref<1x64xf32, #tpu.memory_space<vmem>>, vector<1x64xf32>
    %176 = vector.broadcast %175 : vector<1x64xf32> to vector<16x64xf32>
    %177 = arith.addf %174, %176 : vector<16x64xf32>
    %cst_55 = arith.constant 0.000000e+00 : f32
    %178 = vector.broadcast %cst_55 : f32 to vector<16x64xf32>
    %179 = arith.maximumf %177, %178 : vector<16x64xf32>
    %c2_56 = arith.constant 2 : index
    %c0_57 = arith.constant 0 : index
    %180 = vector.load %arg10[%c2_56, %c0_57] : memref<20x64xf32, #tpu.memory_space<vmem>>, vector<16x64xf32>
    tpu.vector_store %arg10[%c2_56, %c0_57], %179 {strides = array<i32>} : memref<20x64xf32, #tpu.memory_space<vmem>>, vector<16x64xf32>,
    %c0_58 = arith.constant 0 : index
    %c0_59 = arith.constant 0 : index
    %181 = vector.load %arg10[%c0_58, %c0_59] : memref<20x64xf32, #tpu.memory_space<vmem>>, vector<16x64xf32>
    %c2_60 = arith.constant 2 : index
    %c0_61 = arith.constant 0 : index
    %182 = vector.load %arg10[%c2_60, %c0_61] : memref<20x64xf32, #tpu.memory_space<vmem>>, vector<16x64xf32>
    %c4_62 = arith.constant 4 : index
    %c0_63 = arith.constant 0 : index
    %183 = vector.load %arg10[%c4_62, %c0_63] : memref<20x64xf32, #tpu.memory_space<vmem>>, vector<16x64xf32>
    %184 = tpu.concatenate %181, %182, %183 in 1 : vector<16x64xf32>, vector<16x64xf32>, vector<16x64xf32> -> vector<16x192xf32>
    %c0_64 = arith.constant 0 : index
    %c0_65 = arith.constant 0 : index
    %185 = vector.load %arg6[%c0_64, %c0_65] : memref<192x2xf32, #tpu.memory_space<vmem>>, vector<192x2xf32>
    %cst_66 = arith.constant dense<0.000000e+00> : vector<16x2xf32>
    %186 = tpu.matmul %184, %185, %cst_66 {dimension_numbers = #tpu.dot_dimension_numbers<[1], [0], [0], [1], [0, 0, 1, 1], [], []>} : vector<16x192xf32>, vector<192x2xf32>, vector<16x2xf32> -> vector<16x2xf32>
    %c0_67 = arith.constant 0 : index
    %c0_68 = arith.constant 0 : index
    %187 = vector.load %arg7[%c0_67, %c0_68] : memref<1x2xf32, #tpu.memory_space<vmem>>, vector<1x2xf32>
    %188 = vector.broadcast %187 : vector<1x2xf32> to vector<16x2xf32>
    %189 = arith.addf %186, %188 : vector<16x2xf32>
    %190 = tpu.transpose %189, [1, 0] : vector<16x2xf32> -> vector<2x16xf32>
    %191 = vector.extract_strided_slice %190 {offsets = [0, 0], sizes = [1, 16], strides = [1, 1]} : vector<2x16xf32> to vector<1x16xf32>
    %192 = vector.shape_cast %191 : vector<1x16xf32> to vector<1x16xf32>
    %193 = vector.broadcast %192 : vector<1x16xf32> to vector<2x16xf32>
    %194 = vector.extract_strided_slice %190 {offsets = [1, 0], sizes = [1, 16], strides = [1, 1]} : vector<2x16xf32> to vector<1x16xf32>
    %195 = vector.shape_cast %194 : vector<1x16xf32> to vector<1x16xf32>
    %196 = vector.broadcast %195 : vector<1x16xf32> to vector<2x16xf32>
    %197 = tpu.concatenate %193, %196 in 0 : vector<2x16xf32>, vector<2x16xf32> -> vector<4x16xf32>
    %198 = tpu.iota {dimensions = array<i32: 0>} : vector<4x16xi32>
    %c2_i32 = arith.constant 2 : i32
    %c0_i32 = arith.constant 0 : i32
    %199 = arith.cmpi eq, %c2_i32, %c0_i32 : i32
    %c1_i32 = arith.constant 1 : i32
    %200 = arith.select %199, %c1_i32, %c2_i32 : i32
    %201 = vector.broadcast %200 : i32 to vector<4x16xi32>
    %202 = arith.remsi %198, %201 : vector<4x16xi32>
    %c0_i32_69 = arith.constant 0 : i32
    %203 = vector.broadcast %c0_i32_69 : i32 to vector<4x16xi32>
    %204 = arith.cmpi ne, %202, %203 : vector<4x16xi32>
    %c0_i32_70 = arith.constant 0 : i32
    %205 = vector.broadcast %c0_i32_70 : i32 to vector<4x16xi32>
    %206 = arith.cmpi slt, %202, %205 : vector<4x16xi32>
    %c0_i32_71 = arith.constant 0 : i32
    %207 = arith.cmpi slt, %200, %c0_i32_71 : i32
    %208 = vector.broadcast %207 : i1 to vector<4x16xi1>
    %209 = vector.broadcast %208 : vector<4x16xi1> to vector<4x16xi1>
    %210 = arith.xori %206, %209 : vector<4x16xi1>
    %211 = arith.andi %210, %204 : vector<4x16xi1>
    %212 = vector.broadcast %200 : i32 to vector<4x16xi32>
    %213 = arith.addi %202, %212 : vector<4x16xi32>
    %214 = arith.select %211, %213, %202 : vector<4x16xi1>, vector<4x16xi32>
    %215 = tpu.iota {dimensions = array<i32: 1>} : vector<4x16xi32>
    %c2_i32_72 = arith.constant 2 : i32
    %c0_i32_73 = arith.constant 0 : i32
    %216 = arith.cmpi eq, %c2_i32_72, %c0_i32_73 : i32
    %c1_i32_74 = arith.constant 1 : i32
    %217 = arith.select %216, %c1_i32_74, %c2_i32_72 : i32
    %218 = vector.broadcast %217 : i32 to vector<4x16xi32>
    %219 = arith.remsi %215, %218 : vector<4x16xi32>
    %c0_i32_75 = arith.constant 0 : i32
    %220 = vector.broadcast %c0_i32_75 : i32 to vector<4x16xi32>
    %221 = arith.cmpi ne, %219, %220 : vector<4x16xi32>
    %c0_i32_76 = arith.constant 0 : i32
    %222 = vector.broadcast %c0_i32_76 : i32 to vector<4x16xi32>
    %223 = arith.cmpi slt, %219, %222 : vector<4x16xi32>
    %c0_i32_77 = arith.constant 0 : i32
    %224 = arith.cmpi slt, %217, %c0_i32_77 : i32
    %225 = vector.broadcast %224 : i1 to vector<4x16xi1>
    %226 = vector.broadcast %225 : vector<4x16xi1> to vector<4x16xi1>
    %227 = arith.xori %223, %226 : vector<4x16xi1>
    %228 = arith.andi %227, %221 : vector<4x16xi1>
    %229 = vector.broadcast %217 : i32 to vector<4x16xi32>
    %230 = arith.addi %219, %229 : vector<4x16xi32>
    %231 = arith.select %228, %230, %219 : vector<4x16xi1>, vector<4x16xi32>
    %232 = arith.cmpi eq, %214, %231 : vector<4x16xi32>
    %cst_78 = arith.constant 0xFF800000 : f32
    %233 = vector.broadcast %cst_78 : f32 to vector<4x16xf32>
    %234 = arith.select %232, %197, %233 : vector<4x16xi1>, vector<4x16xf32>
    %cst_79 = arith.constant dense<0xFF800000> : vector<4xf32>
    %235 = vector.multi_reduction <maximumf>, %234, %cst_79 [1] : vector<4x16xf32> to vector<4xf32>
    %236 = vector.shape_cast %235 : vector<4xf32> to vector<4x1xf32>
    %237 = vector.broadcast %236 : vector<4x1xf32> to vector<4x16xf32>
    %238 = arith.subf %234, %237 : vector<4x16xf32>
    %239 = math.exp %238 : vector<4x16xf32>
    %cst_80 = arith.constant dense<0.000000e+00> : vector<4xf32>
    %240 = vector.multi_reduction <add>, %239, %cst_80 [1] : vector<4x16xf32> to vector<4xf32>
    %241 = vector.shape_cast %240 : vector<4xf32> to vector<4x1xf32>
    %cst_81 = arith.constant 1.000000e+00 : f32
    %242 = vector.broadcast %cst_81 : f32 to vector<4x1xf32>
    %243 = arith.divf %242, %241 : vector<4x1xf32>
    %244 = vector.broadcast %243 : vector<4x1xf32> to vector<4x16xf32>
    %245 = arith.mulf %239, %244 : vector<4x16xf32>
    %c2_82 = arith.constant 2 : index
    %c0_83 = arith.constant 0 : index
    %246 = vector.load %arg9[%c2_82, %c0_83] : memref<20x32xf32, #tpu.memory_space<vmem>>, vector<16x32xf32>
    %cst_84 = arith.constant dense<0.000000e+00> : vector<4x32xf32>
    %247 = tpu.matmul %245, %246, %cst_84 {dimension_numbers = #tpu.dot_dimension_numbers<[1], [0], [0], [1], [0, 0, 1, 1], [], []>} : vector<4x16xf32>, vector<16x32xf32>, vector<4x32xf32> -> vector<4x32xf32>
    %248 = vector.extract_strided_slice %247 {offsets = [0, 0], sizes = [2, 32], strides = [1, 1]} : vector<4x32xf32> to vector<2x32xf32>
    %249 = vector.extract_strided_slice %247 {offsets = [2, 0], sizes = [2, 32], strides = [1, 1]} : vector<4x32xf32> to vector<2x32xf32>
    %250 = tpu.concatenate %248, %249 in 1 : vector<2x32xf32>, vector<2x32xf32> -> vector<2x64xf32>
    %c0_85 = arith.constant 0 : index
    %c0_86 = arith.constant 0 : index
    %251 = vector.load %arg8[%c0_85, %c0_86] : memref<2x64xf32, #tpu.memory_space<vmem>>, vector<2x64xf32>
    tpu.vector_store %arg8[%c0_85, %c0_86], %250 {strides = array<i32>} : memref<2x64xf32, #tpu.memory_space<vmem>>, vector<2x64xf32>,
    return
  }
}

</mosaic_0001>

<llo_original>
// kernel: a_call__.1
$region0: #{a_call__.1}
  #allocation0 [shape = 'u32[]', space=smem, size = 0x4, offset = 0x4, fixed_abs, tag = 'smem constant byte address 0x4 - core index']
  #allocation1 [shape = 'u32[144,128]{1,0:T(1,128)}', space=vmem, size = 0x12000, scoped, tag = 'internal scratch']
  #allocation2 [shape = 'f32[20,32]{1,0:T(8,128)}', space=vmem, size = 0x3000, scoped, tag = 'scratch operand']
  #allocation3 [shape = 'f32[20,64]{1,0:T(8,128)}', space=vmem, size = 0x3000, scoped, tag = 'scratch operand']
  %s0 = inlined_call_operand.vmem [shape: f32[16,32], index: 0, kind: input, shape index: {}]
  %s1 = inlined_call_operand.hbm [shape: f32[32,128], index: 1, kind: input, shape index: {}]
  %s2 = inlined_call_operand.vmem [shape: f32[32,128], index: 2, kind: input, shape index: {}]
  %s3 = inlined_call_operand.vmem [shape: f32[1,128], index: 3, kind: input, shape index: {}]
  %s4 = inlined_call_operand.hbm [shape: f32[96,64], index: 4, kind: input, shape index: {}]
  %s5 = inlined_call_operand.vmem [shape: f32[1,64], index: 5, kind: input, shape index: {}]
  %s6 = inlined_call_operand.hbm [shape: f32[192,2], index: 6, kind: input, shape index: {}]
  %s7 = inlined_call_operand.vmem [shape: f32[1,2], index: 7, kind: input, shape index: {}]
  %s8 = inlined_call_operand.hbm [shape: f32[2,64], index: 8, kind: output, shape index: {}]
  %s9 = sld [smem:[#allocation0]]
  $region54: #{a_call__.1} parent=0
    _
  %s11 = ssub.s32 1, %s9
  %s12 = scalar_select 0, %s11, %s9
  $region1: #{a_call__.1} parent=0
    #allocation4 [shape = 'u8[16384]{0}', space=vmem, size = 0x4000, scoped, tag = 'input window, operand 1, single buffered']
    #allocation5 [shape = 's32[1]{0}', space=sflag, size = 0x4, scoped, tag = 'scoped memory for a_call__.1']
    #allocation6 [shape = 's32[1]{0}', space=sflag, size = 0x4, scoped, tag = 'scoped memory for a_call__.1']
    #allocation7 [shape = 'u8[49152]{0}', space=vmem, size = 0xc000, scoped, tag = 'input window, operand 4, single buffered']
    #allocation8 [shape = 's32[1]{0}', space=sflag, size = 0x4, scoped, tag = 'scoped memory for a_call__.1']
    #allocation9 [shape = 'u8[98304]{0}', space=vmem, size = 0x18000, scoped, tag = 'input window, operand 6, single buffered']
    #allocation10 [shape = 'u8[1024]{0}', space=vmem, size = 0x400, scoped, tag = 'output window, operand 0, single buffered']
    %13 = vsyncpa [#allocation5], 0
    %14 = vsyncpa [#allocation8], 0
    %15 = vsyncpa [#allocation6], 0
    // Predicated region
    $region2: #{a_call__.1} parent=1 // pred_check
      _
    $region3: #{a_call__.1} parent=1 // pred_check_branch
      %17 = sbr.rel (0) target = $region5
    $region4: #{a_call__.1} parent=1 // pred_region
      _
    $region5: #{a_call__.1} parent=1 // pred_fallthru
      _
    // Predicated region
    $region6: #{a_call__.1} parent=1 // pred_check
      _
    $region7: #{a_call__.1} parent=1 // pred_check_branch
      %19 = sbr.rel (0) target = $region9
    $region8: #{a_call__.1} parent=1 // pred_region
      %s21 = ssub.s32 512, 512
      %22 = vsyncadd [#allocation5], %s21
      %s23 = sshll.u32 [#allocation4], 4
      %s24 = int_to_ptr.vmem [resolvable:$true] %s23
      %29 = dma.hbm_to_vmem [thread:$0]  %s1, 512, %s24, [#allocation5], 128, 128, 8
    $region9: #{a_call__.1} parent=1 // pred_fallthru
      _
    // Predicated region
    $region10: #{a_call__.1} parent=1 // pred_check
      _
    $region11: #{a_call__.1} parent=1 // pred_check_branch
      %31 = sbr.rel (0) target = $region13
    $region12: #{a_call__.1} parent=1 // pred_region
      _
    $region13: #{a_call__.1} parent=1 // pred_fallthru
      _
    // Predicated region
    $region14: #{a_call__.1} parent=1 // pred_check
      _
    $region15: #{a_call__.1} parent=1 // pred_check_branch
      %33 = sbr.rel (0) target = $region17
    $region16: #{a_call__.1} parent=1 // pred_region
      _
    $region17: #{a_call__.1} parent=1 // pred_fallthru
      _
    // Predicated region
    $region18: #{a_call__.1} parent=1 // pred_check
      _
    $region19: #{a_call__.1} parent=1 // pred_check_branch
      %35 = sbr.rel (0) target = $region21
    $region20: #{a_call__.1} parent=1 // pred_region
      %s37 = ssub.s32 1536, 1536
      %38 = vsyncadd [#allocation8], %s37
      %s39 = sshll.u32 [#allocation7], 4
      %s40 = int_to_ptr.vmem [resolvable:$true] %s39
      %45 = dma.hbm_to_vmem [thread:$0]  %s4, 1536, %s40, [#allocation8], 128, 128, 8
    $region21: #{a_call__.1} parent=1 // pred_fallthru
      _
    // Predicated region
    $region22: #{a_call__.1} parent=1 // pred_check
      _
    $region23: #{a_call__.1} parent=1 // pred_check_branch
      %47 = sbr.rel (0) target = $region25
    $region24: #{a_call__.1} parent=1 // pred_region
      _
    $region25: #{a_call__.1} parent=1 // pred_fallthru
      _
    // Predicated region
    $region26: #{a_call__.1} parent=1 // pred_check
      _
    $region27: #{a_call__.1} parent=1 // pred_check_branch
      %49 = sbr.rel (0) target = $region29
    $region28: #{a_call__.1} parent=1 // pred_region
      %s51 = ssub.s32 3072, 3072
      %52 = vsyncadd [#allocation8], %s51
      %s53 = sshll.u32 [#allocation9], 4
      %s54 = int_to_ptr.vmem [resolvable:$true] %s53
      %59 = dma.hbm_to_vmem [thread:$0]  %s6, 3072, %s54, [#allocation8], 128, 128, 8
    $region29: #{a_call__.1} parent=1 // pred_fallthru
      _
    // Predicated region
    $region30: #{a_call__.1} parent=1 // pred_check
      _
    $region31: #{a_call__.1} parent=1 // pred_check_branch
      %61 = sbr.rel (0) target = $region33
    $region32: #{a_call__.1} parent=1 // pred_region
      _
    $region33: #{a_call__.1} parent=1 // pred_fallthru
      _
    // Predicated region
    $region34: #{a_call__.1} parent=1 // pred_check
      _
    $region35: #{a_call__.1} parent=1 // pred_check_branch
      %63 = sbr.rel (0) target = $region37
    $region36: #{a_call__.1} parent=1 // pred_region
      %64 = dma.done [#allocation5], 512
    $region37: #{a_call__.1} parent=1 // pred_fallthru
      _
    // Predicated region
    $region38: #{a_call__.1} parent=1 // pred_check
      _
    $region39: #{a_call__.1} parent=1 // pred_check_branch
      %66 = sbr.rel (0) target = $region41
    $region40: #{a_call__.1} parent=1 // pred_region
      %67 = dma.done [#allocation8], 1536
    $region41: #{a_call__.1} parent=1 // pred_fallthru
      _
    // Predicated region
    $region42: #{a_call__.1} parent=1 // pred_check
      _
    $region43: #{a_call__.1} parent=1 // pred_check_branch
      %69 = sbr.rel (0) target = $region45
    $region44: #{a_call__.1} parent=1 // pred_region
      %70 = dma.done [#allocation8], 3072
    $region45: #{a_call__.1} parent=1 // pred_fallthru
      _
    %vm71 = vcmask 254976
    %72 = vst.msk [vmem:[#allocation2] sm:$0x3] %vm71, 0.0
    %73 = vst.msk [vmem:[#allocation2 + $0x12] sm:$0x3] %vm71, 0.0
    %vm74 = vcmask 517120
    %75 = vst.msk [vmem:[#allocation3] sm:$0x3] %vm74, 0.0
    %76 = vst.msk [vmem:[#allocation3 + $0x12] sm:$0x3] %vm74, 0.0
    %v77 = vld [vmem:[%s0] sm:$0xff]
    %v78 = vld [vmem:[%s0 + $0x8] sm:$0xff]
    %v79 = vld [vmem:[#allocation4] sm:$0xff]
    %v80 = vld [vmem:[#allocation4 + $0x8] sm:$0xff]
    %v81 = vld [vmem:[#allocation4 + $0x10] sm:$0xff]
    %v82 = vld [vmem:[#allocation4 + $0x18] sm:$0xff]
    %v83 = vld [vmem:[%s3] sm:$0x1]
    %v85 = vlaneseq
    %v86 = vshrl.u32 %v85, 7
    %v87 = vsub.s32 0, %v86
    %v88 = vrot.slane %v83, %v87
    %vm90 = vcmask 261120
    %v92 = vsel %vm90, %v77, 0
    %v95 = vsel %vm90, %v78, 0
    %97 = vmatprep.subr.mxu0 0.0
    %98 = vmatpush1.msra.mxu0 %v79
    %99 = vmatprep.subr.mxu0 0.0
    %100 = vmatpush1.msra.mxu0 %v80
    %101 = vmatprep.subr.mxu0 0.0
    %102 = vmatpush1.msra.mxu0 %v81
    %103 = vmatprep.subr.mxu0 0.0
    %104 = vmatpush1.msra.mxu0 %v82
    %105 = vmatprep.subr.mxu0 0.0
    %106 = vmatpush1.msra.mxu0 0.0
    %107 = vmatprep.subr.mxu0 0.0
    %108 = vmatpush1.msra.mxu0 0.0
    %109 = vmatprep.subr.mxu0 0.0
    %110 = vmatpush1.msra.mxu0 0.0
    %111 = vmatprep.subr.mxu0 0.0
    %112 = vmatpush1.msra.mxu0 0.0
    %113 = vmatprep.subr.mxu0 0.0
    %114 = vmatpush1.msra.mxu0 0.0
    %115 = vmatprep.subr.mxu0 0.0
    %116 = vmatpush1.msra.mxu0 0.0
    %117 = vmatprep.subr.mxu0 0.0
    %118 = vmatpush1.msra.mxu0 0.0
    %119 = vmatprep.subr.mxu0 0.0
    %120 = vmatpush1.msra.mxu0 0.0
    %121 = vmatprep.subr.mxu0 0.0
    %122 = vmatpush1.msra.mxu0 0.0
    %123 = vmatprep.subr.mxu0 0.0
    %124 = vmatpush1.msra.mxu0 0.0
    %125 = vmatprep.subr.mxu0 0.0
    %126 = vmatpush1.msra.mxu0 0.0
    %127 = vmatprep.subr.mxu0 0.0
    %128 = vmatpush1.msra.mxu0 0.0
    %129 = vmatprep.subr.mxu0 0.0
    %130 = vmatpush1.msra.mxu0 0.0
    %131 = vmatprep.subr.mxu0 0.0
    %132 = vmatpush1.msra.mxu0 0.0
    %133 = vmatprep.subr.mxu0 0.0
    %134 = vmatpush1.msra.mxu0 0.0
    %135 = vmatprep.subr.mxu0 0.0
    %136 = vmatpush1.msra.mxu0 0.0
    %137 = vmatprep.subr.mxu0 0.0
    %138 = vmatpush1.msra.mxu0 0.0
    %139 = vmatprep.subr.mxu0 0.0
    %140 = vmatpush1.msra.mxu0 0.0
    %141 = vmatprep.subr.mxu0 0.0
    %142 = vmatpush1.msra.mxu0 0.0
    %143 = vmatprep.subr.mxu0 0.0
    %144 = vmatpush1.msra.mxu0 0.0
    %145 = vmatprep.subr.mxu0 0.0
    %146 = vmatpush1.msra.mxu0 0.0
    %147 = vmatprep.subr.mxu0 0.0
    %148 = vmatpush1.msra.mxu0 0.0
    %149 = vmatprep.subr.mxu0 0.0
    %150 = vmatpush1.msra.mxu0 0.0
    %151 = vmatprep.subr.mxu0 0.0
    %152 = vmatpush1.msra.mxu0 0.0
    %153 = vmatprep.subr.mxu0 0.0
    %154 = vmatpush1.msra.mxu0 0.0
    %155 = vmatprep.subr.mxu0 0.0
    %156 = vmatpush1.msra.mxu0 0.0
    %157 = vmatprep.subr.mxu0 0.0
    %158 = vmatpush1.msra.mxu0 0.0
    %159 = vmatprep.subr.mxu0 0.0
    %160 = vmatpush1.msra.mxu0 0.0
    %161 = vmatprep.mubr.f32.mxu0 0.0
    %162 = vmatmul.mubr.f32.gmra.mrb[0].mxu0 %v92
    %v163 = vpop.f32.mrb[0].mxu0
    %v164 = vadd.f32 %v88, %v163
    %v165 = vpop.f32.mrb[0].mxu0
    %166 = vmatprep.mubr.f32.mxu0 0.0
    %167 = vmatmul.mubr.f32.gmra.mrb[0].mxu0 %v95
    %v168 = vpop.f32.mrb[0].mxu0
    %v169 = vadd.f32 %v88, %v168
    %v170 = vpop.f32.mrb[0].mxu0
    %171 = vdwg.mxu0
    %v172 = vld [vmem:[%s2] sm:$0xff]
    %v173 = vld [vmem:[%s2 + $0x8] sm:$0xff]
    %v174 = vld [vmem:[%s2 + $0x10] sm:$0xff]
    %v175 = vld [vmem:[%s2 + $0x18] sm:$0xff]
    %v177 = vsel %vm90, 0.0, 0
    %179 = vmatprep.subr.mxu0 0.0
    %180 = vmatpush1.msra.mxu0 %v172
    %181 = vmatprep.subr.mxu0 0.0
    %182 = vmatpush1.msra.mxu0 %v173
    %183 = vmatprep.subr.mxu0 0.0
    %184 = vmatpush1.msra.mxu0 %v174
    %185 = vmatprep.subr.mxu0 0.0
    %186 = vmatpush1.msra.mxu0 %v175
    %187 = vmatprep.subr.mxu0 0.0
    %188 = vmatpush1.msra.mxu0 0.0
    %189 = vmatprep.subr.mxu0 0.0
    %190 = vmatpush1.msra.mxu0 0.0
    %191 = vmatprep.subr.mxu0 0.0
    %192 = vmatpush1.msra.mxu0 0.0
    %193 = vmatprep.subr.mxu0 0.0
    %194 = vmatpush1.msra.mxu0 0.0
    %195 = vmatprep.subr.mxu0 0.0
    %196 = vmatpush1.msra.mxu0 0.0
    %197 = vmatprep.subr.mxu0 0.0
    %198 = vmatpush1.msra.mxu0 0.0
    %199 = vmatprep.subr.mxu0 0.0
    %200 = vmatpush1.msra.mxu0 0.0
    %201 = vmatprep.subr.mxu0 0.0
    %202 = vmatpush1.msra.mxu0 0.0
    %203 = vmatprep.subr.mxu0 0.0
    %204 = vmatpush1.msra.mxu0 0.0
    %205 = vmatprep.subr.mxu0 0.0
    %206 = vmatpush1.msra.mxu0 0.0
    %207 = vmatprep.subr.mxu0 0.0
    %208 = vmatpush1.msra.mxu0 0.0
    %209 = vmatprep.subr.mxu0 0.0
    %210 = vmatpush1.msra.mxu0 0.0
    %211 = vmatprep.subr.mxu0 0.0
    %212 = vmatpush1.msra.mxu0 0.0
    %213 = vmatprep.subr.mxu0 0.0
    %214 = vmatpush1.msra.mxu0 0.0
    %215 = vmatprep.subr.mxu0 0.0
    %216 = vmatpush1.msra.mxu0 0.0
    %217 = vmatprep.subr.mxu0 0.0
    %218 = vmatpush1.msra.mxu0 0.0
    %219 = vmatprep.subr.mxu0 0.0
    %220 = vmatpush1.msra.mxu0 0.0
    %221 = vmatprep.subr.mxu0 0.0
    %222 = vmatpush1.msra.mxu0 0.0
    %223 = vmatprep.subr.mxu0 0.0
    %224 = vmatpush1.msra.mxu0 0.0
    %225 = vmatprep.subr.mxu0 0.0
    %226 = vmatpush1.msra.mxu0 0.0
    %227 = vmatprep.subr.mxu0 0.0
    %228 = vmatpush1.msra.mxu0 0.0
    %229 = vmatprep.subr.mxu0 0.0
    %230 = vmatpush1.msra.mxu0 0.0
    %231 = vmatprep.subr.mxu0 0.0
    %232 = vmatpush1.msra.mxu0 0.0
    %233 = vmatprep.subr.mxu0 0.0
    %234 = vmatpush1.msra.mxu0 0.0
    %235 = vmatprep.subr.mxu0 0.0
    %236 = vmatpush1.msra.mxu0 0.0
    %237 = vmatprep.subr.mxu0 0.0
    %238 = vmatpush1.msra.mxu0 0.0
    %239 = vmatprep.subr.mxu0 0.0
    %240 = vmatpush1.msra.mxu0 0.0
    %241 = vmatprep.subr.mxu0 0.0
    %242 = vmatpush1.msra.mxu0 0.0
    %243 = vmatprep.mubr.f32.mxu0 0.0
    %244 = vmatmul.mubr.f32.gmra.mrb[0].mxu0 %v177
    %v245 = vpop.f32.mrb[0].mxu0
    %v246 = vadd.f32 0.0, %v245
    %v247 = vpop.f32.mrb[0].mxu0
    %248 = vdwg.mxu0
    %v249 = vadd.f32 %v164, %v246
    %v250 = vxor.u32 %v249, 2147483648
    %v251 = vmul.f32 %v250, 1.442695
    %v252 = vpow.pop %v251
    %v253 = vadd.f32 %v252, 1.0
    %v254 = vrcp.pop %v253
    %v255 = vmul.f32 1.0, %v254
    %v256 = vtanh.pop %v249
    %v257 = vmul.f32 %v255, 0.0
    %259 = vrot.lane.b32.xlu0 %v256, 64
    %v260 = vpop.permute.xlu0 %259
    %v262 = vmul.f32 %v255, %v260
    %264 = vrot.lane.b32.xlu0 %v262, 32
    %v265 = vpop.permute.xlu0 %264
    %v267 = vadd.f32 %v257, %v265
    %v268 = vtanh.pop %v267
    %270 = vrot.lane.b32.xlu0 %v268, 64
    %v271 = vpop.permute.xlu0 %270
    %v273 = vmul.f32 %v255, %v271
    %275 = vrot.lane.b32.xlu0 %v273, 32
    %v276 = vpop.permute.xlu0 %275
    %278 = vst.msk [vmem:[#allocation2 + $0x2] sm:$0x3] %vm71, %v276
    %v279 = vsel %vm90, %v276, 0
    %281 = vmatprep.subr.mxu0 0.0
    %282 = vmatpush1.msra.mxu0 %v172
    %283 = vmatprep.subr.mxu0 0.0
    %284 = vmatpush1.msra.mxu0 %v173
    %285 = vmatprep.subr.mxu0 0.0
    %286 = vmatpush1.msra.mxu0 %v174
    %287 = vmatprep.subr.mxu0 0.0
    %288 = vmatpush1.msra.mxu0 %v175
    %289 = vmatprep.subr.mxu0 0.0
    %290 = vmatpush1.msra.mxu0 0.0
    %291 = vmatprep.subr.mxu0 0.0
    %292 = vmatpush1.msra.mxu0 0.0
    %293 = vmatprep.subr.mxu0 0.0
    %294 = vmatpush1.msra.mxu0 0.0
    %295 = vmatprep.subr.mxu0 0.0
    %296 = vmatpush1.msra.mxu0 0.0
    %297 = vmatprep.subr.mxu0 0.0
    %298 = vmatpush1.msra.mxu0 0.0
    %299 = vmatprep.subr.mxu0 0.0
    %300 = vmatpush1.msra.mxu0 0.0
    %301 = vmatprep.subr.mxu0 0.0
    %302 = vmatpush1.msra.mxu0 0.0
    %303 = vmatprep.subr.mxu0 0.0
    %304 = vmatpush1.msra.mxu0 0.0
    %305 = vmatprep.subr.mxu0 0.0
    %306 = vmatpush1.msra.mxu0 0.0
    %307 = vmatprep.subr.mxu0 0.0
    %308 = vmatpush1.msra.mxu0 0.0
    %309 = vmatprep.subr.mxu0 0.0
    %310 = vmatpush1.msra.mxu0 0.0
    %311 = vmatprep.subr.mxu0 0.0
    %312 = vmatpush1.msra.mxu0 0.0
    %313 = vmatprep.subr.mxu0 0.0
    %314 = vmatpush1.msra.mxu0 0.0
    %315 = vmatprep.subr.mxu0 0.0
    %316 = vmatpush1.msra.mxu0 0.0
    %317 = vmatprep.subr.mxu0 0.0
    %318 = vmatpush1.msra.mxu0 0.0
    %319 = vmatprep.subr.mxu0 0.0
    %320 = vmatpush1.msra.mxu0 0.0
    %321 = vmatprep.subr.mxu0 0.0
    %322 = vmatpush1.msra.mxu0 0.0
    %323 = vmatprep.subr.mxu0 0.0
    %324 = vmatpush1.msra.mxu0 0.0
    %325 = vmatprep.subr.mxu0 0.0
    %326 = vmatpush1.msra.mxu0 0.0
    %327 = vmatprep.subr.mxu0 0.0
    %328 = vmatpush1.msra.mxu0 0.0
    %329 = vmatprep.subr.mxu0 0.0
    %330 = vmatpush1.msra.mxu0 0.0
    %331 = vmatprep.subr.mxu0 0.0
    %332 = vmatpush1.msra.mxu0 0.0
    %333 = vmatprep.subr.mxu0 0.0
    %334 = vmatpush1.msra.mxu0 0.0
    %335 = vmatprep.subr.mxu0 0.0
    %336 = vmatpush1.msra.mxu0 0.0
    %337 = vmatprep.subr.mxu0 0.0
    %338 = vmatpush1.msra.mxu0 0.0
    %339 = vmatprep.subr.mxu0 0.0
    %340 = vmatpush1.msra.mxu0 0.0
    %341 = vmatprep.subr.mxu0 0.0
    %342 = vmatpush1.msra.mxu0 0.0
    %343 = vmatprep.subr.mxu0 0.0
    %344 = vmatpush1.msra.mxu0 0.0
    %345 = vmatprep.mubr.f32.mxu0 0.0
    %346 = vmatmul.mubr.f32.gmra.mrb[0].mxu0 %v279
    %v347 = vpop.f32.mrb[0].mxu0
    %v348 = vadd.f32 0.0, %v347
    %v349 = vpop.f32.mrb[0].mxu0
    %350 = vdwg.mxu0
    %v352 = vrot.slane %v348, 6
    %v354 = vadd.f32 %v164, %v352
    %v355 = vxor.u32 %v354, 2147483648
    %v356 = vmul.f32 %v355, 1.442695
    %v357 = vpow.pop %v356
    %v358 = vadd.f32 %v357, 1.0
    %v359 = vrcp.pop %v358
    %v360 = vmul.f32 1.0, %v359
    %v361 = vtanh.pop %v354
    %v363 = vrot.slane %v267, 6
    %v365 = vmul.f32 %v360, %v363
    %367 = vrot.lane.b32.xlu0 %v361, 64
    %v368 = vpop.permute.xlu0 %367
    %v370 = vmul.f32 %v360, %v368
    %372 = vrot.lane.b32.xlu0 %v370, 32
    %v373 = vpop.permute.xlu0 %372
    %v375 = vadd.f32 %v365, %v373
    %v376 = vtanh.pop %v375
    %378 = vrot.lane.b32.xlu0 %v376, 64
    %v379 = vpop.permute.xlu0 %378
    %v381 = vmul.f32 %v360, %v379
    %383 = vrot.lane.b32.xlu0 %v381, 32
    %v384 = vpop.permute.xlu0 %383
    %vm386 = vcmask 257026
    %387 = vst.msk [vmem:[#allocation2 + $0x2] sm:$0xc] %vm386, %v384
    %v388 = vrot.slane %v381, 2
    %389 = vrot.lane.b32.xlu0 %v388, 32
    %v390 = vpop.permute.xlu0 %389
    %v391 = vsel %vm90, %v390, 0
    %393 = vmatprep.subr.mxu0 0.0
    %394 = vmatpush1.msra.mxu0 %v172
    %395 = vmatprep.subr.mxu0 0.0
    %396 = vmatpush1.msra.mxu0 %v173
    %397 = vmatprep.subr.mxu0 0.0
    %398 = vmatpush1.msra.mxu0 %v174
    %399 = vmatprep.subr.mxu0 0.0
    %400 = vmatpush1.msra.mxu0 %v175
    %401 = vmatprep.subr.mxu0 0.0
    %402 = vmatpush1.msra.mxu0 0.0
    %403 = vmatprep.subr.mxu0 0.0
    %404 = vmatpush1.msra.mxu0 0.0
    %405 = vmatprep.subr.mxu0 0.0
    %406 = vmatpush1.msra.mxu0 0.0
    %407 = vmatprep.subr.mxu0 0.0
    %408 = vmatpush1.msra.mxu0 0.0
    %409 = vmatprep.subr.mxu0 0.0
    %410 = vmatpush1.msra.mxu0 0.0
    %411 = vmatprep.subr.mxu0 0.0
    %412 = vmatpush1.msra.mxu0 0.0
    %413 = vmatprep.subr.mxu0 0.0
    %414 = vmatpush1.msra.mxu0 0.0
    %415 = vmatprep.subr.mxu0 0.0
    %416 = vmatpush1.msra.mxu0 0.0
    %417 = vmatprep.subr.mxu0 0.0
    %418 = vmatpush1.msra.mxu0 0.0
    %419 = vmatprep.subr.mxu0 0.0
    %420 = vmatpush1.msra.mxu0 0.0
    %421 = vmatprep.subr.mxu0 0.0
    %422 = vmatpush1.msra.mxu0 0.0
    %423 = vmatprep.subr.mxu0 0.0
    %424 = vmatpush1.msra.mxu0 0.0
    %425 = vmatprep.subr.mxu0 0.0
    %426 = vmatpush1.msra.mxu0 0.0
    %427 = vmatprep.subr.mxu0 0.0
    %428 = vmatpush1.msra.mxu0 0.0
    %429 = vmatprep.subr.mxu0 0.0
    %430 = vmatpush1.msra.mxu0 0.0
    %431 = vmatprep.subr.mxu0 0.0
    %432 = vmatpush1.msra.mxu0 0.0
    %433 = vmatprep.subr.mxu0 0.0
    %434 = vmatpush1.msra.mxu0 0.0
    %435 = vmatprep.subr.mxu0 0.0
    %436 = vmatpush1.msra.mxu0 0.0
    %437 = vmatprep.subr.mxu0 0.0
    %438 = vmatpush1.msra.mxu0 0.0
    %439 = vmatprep.subr.mxu0 0.0
    %440 = vmatpush1.msra.mxu0 0.0
    %441 = vmatprep.subr.mxu0 0.0
    %442 = vmatpush1.msra.mxu0 0.0
    %443 = vmatprep.subr.mxu0 0.0
    %444 = vmatpush1.msra.mxu0 0.0
    %445 = vmatprep.subr.mxu0 0.0
    %446 = vmatpush1.msra.mxu0 0.0
    %447 = vmatprep.subr.mxu0 0.0
    %448 = vmatpush1.msra.mxu0 0.0
    %449 = vmatprep.subr.mxu0 0.0
    %450 = vmatpush1.msra.mxu0 0.0
    %451 = vmatprep.subr.mxu0 0.0
    %452 = vmatpush1.msra.mxu0 0.0
    %453 = vmatprep.subr.mxu0 0.0
    %454 = vmatpush1.msra.mxu0 0.0
    %455 = vmatprep.subr.mxu0 0.0
    %456 = vmatpush1.msra.mxu0 0.0
    %457 = vmatprep.mubr.f32.mxu0 0.0
    %458 = vmatmul.mubr.f32.gmra.mrb[0].mxu0 %v391
    %v459 = vpop.f32.mrb[0].mxu0
    %v460 = vadd.f32 0.0, %v459
    %v461 = vpop.f32.mrb[0].mxu0
    %462 = vdwg.mxu0
    %v464 = vrot.slane %v460, 4
    %v466 = vadd.f32 %v164, %v464
    %v467 = vxor.u32 %v466, 2147483648
    %v468 = vmul.f32 %v467, 1.442695
    %v469 = vpow.pop %v468
    %v470 = vadd.f32 %v469, 1.0
    %v471 = vrcp.pop %v470
    %v472 = vmul.f32 1.0, %v471
    %v473 = vtanh.pop %v466
    %v475 = vrot.slane %v375, 6
    %v477 = vmul.f32 %v472, %v475
    %479 = vrot.lane.b32.xlu0 %v473, 64
    %v480 = vpop.permute.xlu0 %479
    %v482 = vmul.f32 %v472, %v480
    %484 = vrot.lane.b32.xlu0 %v482, 32
    %v485 = vpop.permute.xlu0 %484
    %v487 = vadd.f32 %v477, %v485
    %v488 = vtanh.pop %v487
    %490 = vrot.lane.b32.xlu0 %v488, 64
    %v491 = vpop.permute.xlu0 %490
    %v493 = vmul.f32 %v472, %v491
    %495 = vrot.lane.b32.xlu0 %v493, 32
    %v496 = vpop.permute.xlu0 %495
    %vm498 = vcmask 259076
    %499 = vst.msk [vmem:[#allocation2 + $0x2] sm:$0x30] %vm498, %v496
    %v500 = vrot.slane %v493, 4
    %501 = vrot.lane.b32.xlu0 %v500, 32
    %v502 = vpop.permute.xlu0 %501
    %v503 = vsel %vm90, %v502, 0
    %505 = vmatprep.subr.mxu0 0.0
    %506 = vmatpush1.msra.mxu0 %v172
    %507 = vmatprep.subr.mxu0 0.0
    %508 = vmatpush1.msra.mxu0 %v173
    %509 = vmatprep.subr.mxu0 0.0
    %510 = vmatpush1.msra.mxu0 %v174
    %511 = vmatprep.subr.mxu0 0.0
    %512 = vmatpush1.msra.mxu0 %v175
    %513 = vmatprep.subr.mxu0 0.0
    %514 = vmatpush1.msra.mxu0 0.0
    %515 = vmatprep.subr.mxu0 0.0
    %516 = vmatpush1.msra.mxu0 0.0
    %517 = vmatprep.subr.mxu0 0.0
    %518 = vmatpush1.msra.mxu0 0.0
    %519 = vmatprep.subr.mxu0 0.0
    %520 = vmatpush1.msra.mxu0 0.0
    %521 = vmatprep.subr.mxu0 0.0
    %522 = vmatpush1.msra.mxu0 0.0
    %523 = vmatprep.subr.mxu0 0.0
    %524 = vmatpush1.msra.mxu0 0.0
    %525 = vmatprep.subr.mxu0 0.0
    %526 = vmatpush1.msra.mxu0 0.0
    %527 = vmatprep.subr.mxu0 0.0
    %528 = vmatpush1.msra.mxu0 0.0
    %529 = vmatprep.subr.mxu0 0.0
    %530 = vmatpush1.msra.mxu0 0.0
    %531 = vmatprep.subr.mxu0 0.0
    %532 = vmatpush1.msra.mxu0 0.0
    %533 = vmatprep.subr.mxu0 0.0
    %534 = vmatpush1.msra.mxu0 0.0
    %535 = vmatprep.subr.mxu0 0.0
    %536 = vmatpush1.msra.mxu0 0.0
    %537 = vmatprep.subr.mxu0 0.0
    %538 = vmatpush1.msra.mxu0 0.0
    %539 = vmatprep.subr.mxu0 0.0
    %540 = vmatpush1.msra.mxu0 0.0
    %541 = vmatprep.subr.mxu0 0.0
    %542 = vmatpush1.msra.mxu0 0.0
    %543 = vmatprep.subr.mxu0 0.0
    %544 = vmatpush1.msra.mxu0 0.0
    %545 = vmatprep.subr.mxu0 0.0
    %546 = vmatpush1.msra.mxu0 0.0
    %547 = vmatprep.subr.mxu0 0.0
    %548 = vmatpush1.msra.mxu0 0.0
    %549 = vmatprep.subr.mxu0 0.0
    %550 = vmatpush1.msra.mxu0 0.0
    %551 = vmatprep.subr.mxu0 0.0
    %552 = vmatpush1.msra.mxu0 0.0
    %553 = vmatprep.subr.mxu0 0.0
    %554 = vmatpush1.msra.mxu0 0.0
    %555 = vmatprep.subr.mxu0 0.0
    %556 = vmatpush1.msra.mxu0 0.0
    %557 = vmatprep.subr.mxu0 0.0
    %558 = vmatpush1.msra.mxu0 0.0
    %559 = vmatprep.subr.mxu0 0.0
    %560 = vmatpush1.msra.mxu0 0.0
    %561 = vmatprep.subr.mxu0 0.0
    %562 = vmatpush1.msra.mxu0 0.0
    %563 = vmatprep.subr.mxu0 0.0
    %564 = vmatpush1.msra.mxu0 0.0
    %565 = vmatprep.subr.mxu0 0.0
    %566 = vmatpush1.msra.mxu0 0.0
    %567 = vmatprep.subr.mxu0 0.0
    %568 = vmatpush1.msra.mxu0 0.0
    %569 = vmatprep.mubr.f32.mxu0 0.0
    %570 = vmatmul.mubr.f32.gmra.mrb[0].mxu0 %v503
    %v571 = vpop.f32.mrb[0].mxu0
    %v572 = vadd.f32 0.0, %v571
    %v573 = vpop.f32.mrb[0].mxu0
    %574 = vdwg.mxu0
    %v576 = vrot.slane %v572, 2
    %v578 = vadd.f32 %v164, %v576
    %v579 = vxor.u32 %v578, 2147483648
    %v580 = vmul.f32 %v579, 1.442695
    %v581 = vpow.pop %v580
    %v582 = vadd.f32 %v581, 1.0
    %v583 = vrcp.pop %v582
    %v584 = vmul.f32 1.0, %v583
    %v585 = vtanh.pop %v578
    %v587 = vrot.slane %v487, 6
    %v589 = vmul.f32 %v584, %v587
    %591 = vrot.lane.b32.xlu0 %v585, 64
    %v592 = vpop.permute.xlu0 %591
    %v594 = vmul.f32 %v584, %v592
    %596 = vrot.lane.b32.xlu0 %v594, 32
    %v597 = vpop.permute.xlu0 %596
    %v599 = vadd.f32 %v589, %v597
    %v600 = vtanh.pop %v599
    %602 = vrot.lane.b32.xlu0 %v600, 64
    %v603 = vpop.permute.xlu0 %602
    %v605 = vmul.f32 %v584, %v603
    %607 = vrot.lane.b32.xlu0 %v605, 32
    %v608 = vpop.permute.xlu0 %607
    %vm610 = vcmask 261126
    %611 = vst.msk [vmem:[#allocation2 + $0x2] sm:$0xc0] %vm610, %v608
    %v612 = vrot.slane %v605, 6
    %613 = vrot.lane.b32.xlu0 %v612, 32
    %v614 = vpop.permute.xlu0 %613
    %v615 = vsel %vm90, %v614, 0
    %617 = vmatprep.subr.mxu0 0.0
    %618 = vmatpush1.msra.mxu0 %v172
    %619 = vmatprep.subr.mxu0 0.0
    %620 = vmatpush1.msra.mxu0 %v173
    %621 = vmatprep.subr.mxu0 0.0
    %622 = vmatpush1.msra.mxu0 %v174
    %623 = vmatprep.subr.mxu0 0.0
    %624 = vmatpush1.msra.mxu0 %v175
    %625 = vmatprep.subr.mxu0 0.0
    %626 = vmatpush1.msra.mxu0 0.0
    %627 = vmatprep.subr.mxu0 0.0
    %628 = vmatpush1.msra.mxu0 0.0
    %629 = vmatprep.subr.mxu0 0.0
    %630 = vmatpush1.msra.mxu0 0.0
    %631 = vmatprep.subr.mxu0 0.0
    %632 = vmatpush1.msra.mxu0 0.0
    %633 = vmatprep.subr.mxu0 0.0
    %634 = vmatpush1.msra.mxu0 0.0
    %635 = vmatprep.subr.mxu0 0.0
    %636 = vmatpush1.msra.mxu0 0.0
    %637 = vmatprep.subr.mxu0 0.0
    %638 = vmatpush1.msra.mxu0 0.0
    %639 = vmatprep.subr.mxu0 0.0
    %640 = vmatpush1.msra.mxu0 0.0
    %641 = vmatprep.subr.mxu0 0.0
    %642 = vmatpush1.msra.mxu0 0.0
    %643 = vmatprep.subr.mxu0 0.0
    %644 = vmatpush1.msra.mxu0 0.0
    %645 = vmatprep.subr.mxu0 0.0
    %646 = vmatpush1.msra.mxu0 0.0
    %647 = vmatprep.subr.mxu0 0.0
    %648 = vmatpush1.msra.mxu0 0.0
    %649 = vmatprep.subr.mxu0 0.0
    %650 = vmatpush1.msra.mxu0 0.0
    %651 = vmatprep.subr.mxu0 0.0
    %652 = vmatpush1.msra.mxu0 0.0
    %653 = vmatprep.subr.mxu0 0.0
    %654 = vmatpush1.msra.mxu0 0.0
    %655 = vmatprep.subr.mxu0 0.0
    %656 = vmatpush1.msra.mxu0 0.0
    %657 = vmatprep.subr.mxu0 0.0
    %658 = vmatpush1.msra.mxu0 0.0
    %659 = vmatprep.subr.mxu0 0.0
    %660 = vmatpush1.msra.mxu0 0.0
    %661 = vmatprep.subr.mxu0 0.0
    %662 = vmatpush1.msra.mxu0 0.0
    %663 = vmatprep.subr.mxu0 0.0
    %664 = vmatpush1.msra.mxu0 0.0
    %665 = vmatprep.subr.mxu0 0.0
    %666 = vmatpush1.msra.mxu0 0.0
    %667 = vmatprep.subr.mxu0 0.0
    %668 = vmatpush1.msra.mxu0 0.0
    %669 = vmatprep.subr.mxu0 0.0
    %670 = vmatpush1.msra.mxu0 0.0
    %671 = vmatprep.subr.mxu0 0.0
    %672 = vmatpush1.msra.mxu0 0.0
    %673 = vmatprep.subr.mxu0 0.0
    %674 = vmatpush1.msra.mxu0 0.0
    %675 = vmatprep.subr.mxu0 0.0
    %676 = vmatpush1.msra.mxu0 0.0
    %677 = vmatprep.subr.mxu0 0.0
    %678 = vmatpush1.msra.mxu0 0.0
    %679 = vmatprep.subr.mxu0 0.0
    %680 = vmatpush1.msra.mxu0 0.0
    %681 = vmatprep.mubr.f32.mxu0 0.0
    %682 = vmatmul.mubr.f32.gmra.mrb[0].mxu0 %v615
    %v683 = vpop.f32.mrb[0].mxu0
    %v684 = vadd.f32 0.0, %v683
    %v685 = vpop.f32.mrb[0].mxu0
    %686 = vdwg.mxu0
    %v687 = vadd.f32 %v169, %v684
    %v688 = vxor.u32 %v687, 2147483648
    %v689 = vmul.f32 %v688, 1.442695
    %v690 = vpow.pop %v689
    %v691 = vadd.f32 %v690, 1.0
    %v692 = vrcp.pop %v691
    %v693 = vmul.f32 1.0, %v692
    %v694 = vtanh.pop %v687
    %v696 = vrot.slane %v599, 6
    %v698 = vmul.f32 %v693, %v696
    %700 = vrot.lane.b32.xlu0 %v694, 64
    %v701 = vpop.permute.xlu0 %700
    %v703 = vmul.f32 %v693, %v701
    %705 = vrot.lane.b32.xlu0 %v703, 32
    %v706 = vpop.permute.xlu0 %705
    %v708 = vadd.f32 %v698, %v706
    %v709 = vtanh.pop %v708
    %711 = vrot.lane.b32.xlu0 %v709, 64
    %v712 = vpop.permute.xlu0 %711
    %v714 = vmul.f32 %v693, %v712
    %716 = vrot.lane.b32.xlu0 %v714, 32
    %v717 = vpop.permute.xlu0 %716
    %719 = vst.msk [vmem:[#allocation2 + $0xa] sm:$0x3] %vm71, %v717
    %v720 = vsel %vm90, %v717, 0
    %722 = vmatprep.subr.mxu0 0.0
    %723 = vmatpush1.msra.mxu0 %v172
    %724 = vmatprep.subr.mxu0 0.0
    %725 = vmatpush1.msra.mxu0 %v173
    %726 = vmatprep.subr.mxu0 0.0
    %727 = vmatpush1.msra.mxu0 %v174
    %728 = vmatprep.subr.mxu0 0.0
    %729 = vmatpush1.msra.mxu0 %v175
    %730 = vmatprep.subr.mxu0 0.0
    %731 = vmatpush1.msra.mxu0 0.0
    %732 = vmatprep.subr.mxu0 0.0
    %733 = vmatpush1.msra.mxu0 0.0
    %734 = vmatprep.subr.mxu0 0.0
    %735 = vmatpush1.msra.mxu0 0.0
    %736 = vmatprep.subr.mxu0 0.0
    %737 = vmatpush1.msra.mxu0 0.0
    %738 = vmatprep.subr.mxu0 0.0
    %739 = vmatpush1.msra.mxu0 0.0
    %740 = vmatprep.subr.mxu0 0.0
    %741 = vmatpush1.msra.mxu0 0.0
    %742 = vmatprep.subr.mxu0 0.0
    %743 = vmatpush1.msra.mxu0 0.0
    %744 = vmatprep.subr.mxu0 0.0
    %745 = vmatpush1.msra.mxu0 0.0
    %746 = vmatprep.subr.mxu0 0.0
    %747 = vmatpush1.msra.mxu0 0.0
    %748 = vmatprep.subr.mxu0 0.0
    %749 = vmatpush1.msra.mxu0 0.0
    %750 = vmatprep.subr.mxu0 0.0
    %751 = vmatpush1.msra.mxu0 0.0
    %752 = vmatprep.subr.mxu0 0.0
    %753 = vmatpush1.msra.mxu0 0.0
    %754 = vmatprep.subr.mxu0 0.0
    %755 = vmatpush1.msra.mxu0 0.0
    %756 = vmatprep.subr.mxu0 0.0
    %757 = vmatpush1.msra.mxu0 0.0
    %758 = vmatprep.subr.mxu0 0.0
    %759 = vmatpush1.msra.mxu0 0.0
    %760 = vmatprep.subr.mxu0 0.0
    %761 = vmatpush1.msra.mxu0 0.0
    %762 = vmatprep.subr.mxu0 0.0
    %763 = vmatpush1.msra.mxu0 0.0
    %764 = vmatprep.subr.mxu0 0.0
    %765 = vmatpush1.msra.mxu0 0.0
    %766 = vmatprep.subr.mxu0 0.0
    %767 = vmatpush1.msra.mxu0 0.0
    %768 = vmatprep.subr.mxu0 0.0
    %769 = vmatpush1.msra.mxu0 0.0
    %770 = vmatprep.subr.mxu0 0.0
    %771 = vmatpush1.msra.mxu0 0.0
    %772 = vmatprep.subr.mxu0 0.0
    %773 = vmatpush1.msra.mxu0 0.0
    %774 = vmatprep.subr.mxu0 0.0
    %775 = vmatpush1.msra.mxu0 0.0
    %776 = vmatprep.subr.mxu0 0.0
    %777 = vmatpush1.msra.mxu0 0.0
    %778 = vmatprep.subr.mxu0 0.0
    %779 = vmatpush1.msra.mxu0 0.0
    %780 = vmatprep.subr.mxu0 0.0
    %781 = vmatpush1.msra.mxu0 0.0
    %782 = vmatprep.subr.mxu0 0.0
    %783 = vmatpush1.msra.mxu0 0.0
    %784 = vmatprep.subr.mxu0 0.0
    %785 = vmatpush1.msra.mxu0 0.0
    %786 = vmatprep.mubr.f32.mxu0 0.0
    %787 = vmatmul.mubr.f32.gmra.mrb[0].mxu0 %v720
    %v788 = vpop.f32.mrb[0].mxu0
    %v789 = vadd.f32 0.0, %v788
    %v790 = vpop.f32.mrb[0].mxu0
    %791 = vdwg.mxu0
    %v793 = vrot.slane %v789, 6
    %v795 = vadd.f32 %v169, %v793
    %v796 = vxor.u32 %v795, 2147483648
    %v797 = vmul.f32 %v796, 1.442695
    %v798 = vpow.pop %v797
    %v799 = vadd.f32 %v798, 1.0
    %v800 = vrcp.pop %v799
    %v801 = vmul.f32 1.0, %v800
    %v802 = vtanh.pop %v795
    %v804 = vrot.slane %v708, 6
    %v806 = vmul.f32 %v801, %v804
    %808 = vrot.lane.b32.xlu0 %v802, 64
    %v809 = vpop.permute.xlu0 %808
    %v811 = vmul.f32 %v801, %v809
    %813 = vrot.lane.b32.xlu0 %v811, 32
    %v814 = vpop.permute.xlu0 %813
    %v816 = vadd.f32 %v806, %v814
    %v817 = vtanh.pop %v816
    %819 = vrot.lane.b32.xlu0 %v817, 64
    %v820 = vpop.permute.xlu0 %819
    %v822 = vmul.f32 %v801, %v820
    %824 = vrot.lane.b32.xlu0 %v822, 32
    %v825 = vpop.permute.xlu0 %824
    %827 = vst.msk [vmem:[#allocation2 + $0xa] sm:$0xc] %vm386, %v825
    %v828 = vrot.slane %v822, 2
    %829 = vrot.lane.b32.xlu0 %v828, 32
    %v830 = vpop.permute.xlu0 %829
    %v831 = vsel %vm90, %v830, 0
    %833 = vmatprep.subr.mxu0 0.0
    %834 = vmatpush1.msra.mxu0 %v172
    %835 = vmatprep.subr.mxu0 0.0
    %836 = vmatpush1.msra.mxu0 %v173
    %837 = vmatprep.subr.mxu0 0.0
    %838 = vmatpush1.msra.mxu0 %v174
    %839 = vmatprep.subr.mxu0 0.0
    %840 = vmatpush1.msra.mxu0 %v175
    %841 = vmatprep.subr.mxu0 0.0
    %842 = vmatpush1.msra.mxu0 0.0
    %843 = vmatprep.subr.mxu0 0.0
    %844 = vmatpush1.msra.mxu0 0.0
    %845 = vmatprep.subr.mxu0 0.0
    %846 = vmatpush1.msra.mxu0 0.0
    %847 = vmatprep.subr.mxu0 0.0
    %848 = vmatpush1.msra.mxu0 0.0
    %849 = vmatprep.subr.mxu0 0.0
    %850 = vmatpush1.msra.mxu0 0.0
    %851 = vmatprep.subr.mxu0 0.0
    %852 = vmatpush1.msra.mxu0 0.0
    %853 = vmatprep.subr.mxu0 0.0
    %854 = vmatpush1.msra.mxu0 0.0
    %855 = vmatprep.subr.mxu0 0.0
    %856 = vmatpush1.msra.mxu0 0.0
    %857 = vmatprep.subr.mxu0 0.0
    %858 = vmatpush1.msra.mxu0 0.0
    %859 = vmatprep.subr.mxu0 0.0
    %860 = vmatpush1.msra.mxu0 0.0
    %861 = vmatprep.subr.mxu0 0.0
    %862 = vmatpush1.msra.mxu0 0.0
    %863 = vmatprep.subr.mxu0 0.0
    %864 = vmatpush1.msra.mxu0 0.0
    %865 = vmatprep.subr.mxu0 0.0
    %866 = vmatpush1.msra.mxu0 0.0
    %867 = vmatprep.subr.mxu0 0.0
    %868 = vmatpush1.msra.mxu0 0.0
    %869 = vmatprep.subr.mxu0 0.0
    %870 = vmatpush1.msra.mxu0 0.0
    %871 = vmatprep.subr.mxu0 0.0
    %872 = vmatpush1.msra.mxu0 0.0
    %873 = vmatprep.subr.mxu0 0.0
    %874 = vmatpush1.msra.mxu0 0.0
    %875 = vmatprep.subr.mxu0 0.0
    %876 = vmatpush1.msra.mxu0 0.0
    %877 = vmatprep.subr.mxu0 0.0
    %878 = vmatpush1.msra.mxu0 0.0
    %879 = vmatprep.subr.mxu0 0.0
    %880 = vmatpush1.msra.mxu0 0.0
    %881 = vmatprep.subr.mxu0 0.0
    %882 = vmatpush1.msra.mxu0 0.0
    %883 = vmatprep.subr.mxu0 0.0
    %884 = vmatpush1.msra.mxu0 0.0
    %885 = vmatprep.subr.mxu0 0.0
    %886 = vmatpush1.msra.mxu0 0.0
    %887 = vmatprep.subr.mxu0 0.0
    %888 = vmatpush1.msra.mxu0 0.0
    %889 = vmatprep.subr.mxu0 0.0
    %890 = vmatpush1.msra.mxu0 0.0
    %891 = vmatprep.subr.mxu0 0.0
    %892 = vmatpush1.msra.mxu0 0.0
    %893 = vmatprep.subr.mxu0 0.0
    %894 = vmatpush1.msra.mxu0 0.0
    %895 = vmatprep.subr.mxu0 0.0
    %896 = vmatpush1.msra.mxu0 0.0
    %897 = vmatprep.mubr.f32.mxu0 0.0
    %898 = vmatmul.mubr.f32.gmra.mrb[0].mxu0 %v831
    %v899 = vpop.f32.mrb[0].mxu0
    %v900 = vadd.f32 0.0, %v899
    %v901 = vpop.f32.mrb[0].mxu0
    %902 = vdwg.mxu0
    %v904 = vrot.slane %v900, 4
    %v906 = vadd.f32 %v169, %v904
    %v907 = vxor.u32 %v906, 2147483648
    %v908 = vmul.f32 %v907, 1.442695
    %v909 = vpow.pop %v908
    %v910 = vadd.f32 %v909, 1.0
    %v911 = vrcp.pop %v910
    %v912 = vmul.f32 1.0, %v911
    %v913 = vtanh.pop %v906
    %v915 = vrot.slane %v816, 6
    %v917 = vmul.f32 %v912, %v915
    %919 = vrot.lane.b32.xlu0 %v913, 64
    %v920 = vpop.permute.xlu0 %919
    %v922 = vmul.f32 %v912, %v920
    %924 = vrot.lane.b32.xlu0 %v922, 32
    %v925 = vpop.permute.xlu0 %924
    %v927 = vadd.f32 %v917, %v925
    %v928 = vtanh.pop %v927
    %930 = vrot.lane.b32.xlu0 %v928, 64
    %v931 = vpop.permute.xlu0 %930
    %v933 = vmul.f32 %v912, %v931
    %935 = vrot.lane.b32.xlu0 %v933, 32
    %v936 = vpop.permute.xlu0 %935
    %938 = vst.msk [vmem:[#allocation2 + $0xa] sm:$0x30] %vm498, %v936
    %v939 = vrot.slane %v933, 4
    %940 = vrot.lane.b32.xlu0 %v939, 32
    %v941 = vpop.permute.xlu0 %940
    %v942 = vsel %vm90, %v941, 0
    %944 = vmatprep.subr.mxu0 0.0
    %945 = vmatpush1.msra.mxu0 %v172
    %946 = vmatprep.subr.mxu0 0.0
    %947 = vmatpush1.msra.mxu0 %v173
    %948 = vmatprep.subr.mxu0 0.0
    %949 = vmatpush1.msra.mxu0 %v174
    %950 = vmatprep.subr.mxu0 0.0
    %951 = vmatpush1.msra.mxu0 %v175
    %952 = vmatprep.subr.mxu0 0.0
    %953 = vmatpush1.msra.mxu0 0.0
    %954 = vmatprep.subr.mxu0 0.0
    %955 = vmatpush1.msra.mxu0 0.0
    %956 = vmatprep.subr.mxu0 0.0
    %957 = vmatpush1.msra.mxu0 0.0
    %958 = vmatprep.subr.mxu0 0.0
    %959 = vmatpush1.msra.mxu0 0.0
    %960 = vmatprep.subr.mxu0 0.0
    %961 = vmatpush1.msra.mxu0 0.0
    %962 = vmatprep.subr.mxu0 0.0
    %963 = vmatpush1.msra.mxu0 0.0
    %964 = vmatprep.subr.mxu0 0.0
    %965 = vmatpush1.msra.mxu0 0.0
    %966 = vmatprep.subr.mxu0 0.0
    %967 = vmatpush1.msra.mxu0 0.0
    %968 = vmatprep.subr.mxu0 0.0
    %969 = vmatpush1.msra.mxu0 0.0
    %970 = vmatprep.subr.mxu0 0.0
    %971 = vmatpush1.msra.mxu0 0.0
    %972 = vmatprep.subr.mxu0 0.0
    %973 = vmatpush1.msra.mxu0 0.0
    %974 = vmatprep.subr.mxu0 0.0
    %975 = vmatpush1.msra.mxu0 0.0
    %976 = vmatprep.subr.mxu0 0.0
    %977 = vmatpush1.msra.mxu0 0.0
    %978 = vmatprep.subr.mxu0 0.0
    %979 = vmatpush1.msra.mxu0 0.0
    %980 = vmatprep.subr.mxu0 0.0
    %981 = vmatpush1.msra.mxu0 0.0
    %982 = vmatprep.subr.mxu0 0.0
    %983 = vmatpush1.msra.mxu0 0.0
    %984 = vmatprep.subr.mxu0 0.0
    %985 = vmatpush1.msra.mxu0 0.0
    %986 = vmatprep.subr.mxu0 0.0
    %987 = vmatpush1.msra.mxu0 0.0
    %988 = vmatprep.subr.mxu0 0.0
    %989 = vmatpush1.msra.mxu0 0.0
    %990 = vmatprep.subr.mxu0 0.0
    %991 = vmatpush1.msra.mxu0 0.0
    %992 = vmatprep.subr.mxu0 0.0
    %993 = vmatpush1.msra.mxu0 0.0
    %994 = vmatprep.subr.mxu0 0.0
    %995 = vmatpush1.msra.mxu0 0.0
    %996 = vmatprep.subr.mxu0 0.0
    %997 = vmatpush1.msra.mxu0 0.0
    %998 = vmatprep.subr.mxu0 0.0
    %999 = vmatpush1.msra.mxu0 0.0
    %1000 = vmatprep.subr.mxu0 0.0
    %1001 = vmatpush1.msra.mxu0 0.0
    %1002 = vmatprep.subr.mxu0 0.0
    %1003 = vmatpush1.msra.mxu0 0.0
    %1004 = vmatprep.subr.mxu0 0.0
    %1005 = vmatpush1.msra.mxu0 0.0
    %1006 = vmatprep.subr.mxu0 0.0
    %1007 = vmatpush1.msra.mxu0 0.0
    %1008 = vmatprep.mubr.f32.mxu0 0.0
    %1009 = vmatmul.mubr.f32.gmra.mrb[0].mxu0 %v942
    %v1010 = vpop.f32.mrb[0].mxu0
    %v1011 = vadd.f32 0.0, %v1010
    %v1012 = vpop.f32.mrb[0].mxu0
    %1013 = vdwg.mxu0
    %v1015 = vrot.slane %v1011, 2
    %v1017 = vadd.f32 %v169, %v1015
    %v1018 = vxor.u32 %v1017, 2147483648
    %v1019 = vmul.f32 %v1018, 1.442695
    %v1020 = vpow.pop %v1019
    %v1021 = vadd.f32 %v1020, 1.0
    %v1022 = vrcp.pop %v1021
    %v1023 = vmul.f32 1.0, %v1022
    %v1024 = vtanh.pop %v1017
    %v1026 = vrot.slane %v927, 6
    %v1028 = vmul.f32 %v1023, %v1026
    %1030 = vrot.lane.b32.xlu0 %v1024, 64
    %v1031 = vpop.permute.xlu0 %1030
    %v1033 = vmul.f32 %v1023, %v1031
    %1035 = vrot.lane.b32.xlu0 %v1033, 32
    %v1036 = vpop.permute.xlu0 %1035
    %v1038 = vadd.f32 %v1028, %v1036
    %v1039 = vtanh.pop %v1038
    %1041 = vrot.lane.b32.xlu0 %v1039, 64
    %v1042 = vpop.permute.xlu0 %1041
    %v1044 = vmul.f32 %v1023, %v1042
    %1046 = vrot.lane.b32.xlu0 %v1044, 32
    %v1047 = vpop.permute.xlu0 %1046
    %1049 = vst.msk [vmem:[#allocation2 + $0xa] sm:$0xc0] %vm610, %v1047
    %v1050 = vld [vmem:[#allocation2] sm:$0xff]
    %v1051 = vld [vmem:[#allocation2 + $0x8] sm:$0xff]
    %v1052 = vld [vmem:[#allocation2 + $0x2] sm:$0xff]
    %v1053 = vld [vmem:[#allocation2 + $0xa] sm:$0xff]
    %v1054 = vld [vmem:[#allocation2 + $0x4] sm:$0xff]
    %v1055 = vld [vmem:[#allocation2 + $0xc] sm:$0xff]
    %1058 = vrot.lane.b32.xlu0 %v1052, 32
    %v1059 = vpop.permute.xlu0 %1058
    %1060 = vrot.lane.b32.xlu0 %v1053, 32
    %v1061 = vpop.permute.xlu0 %1060
    %1066 = vrot.lane.b32.xlu0 %v1054, 64
    %v1067 = vpop.permute.xlu0 %1066
    %1068 = vrot.lane.b32.xlu0 %v1055, 64
    %v1069 = vpop.permute.xlu0 %1068
    %v1072 = vsel %vm90, %v1050, %v1059
    %v1073 = vsel %vm90, %v1051, %v1061
    %vm1074 = vcmask 523264
    %v1075 = vsel %vm1074, %v1072, %v1067
    %v1076 = vsel %vm1074, %v1073, %v1069
    %v1077 = vld [vmem:[#allocation7] sm:$0xff]
    %v1078 = vld [vmem:[#allocation7 + $0x8] sm:$0xff]
    %v1079 = vld [vmem:[#allocation7 + $0x10] sm:$0xff]
    %v1080 = vld [vmem:[#allocation7 + $0x18] sm:$0xff]
    %v1081 = vld [vmem:[#allocation7 + $0x20] sm:$0xff]
    %v1082 = vld [vmem:[#allocation7 + $0x28] sm:$0xff]
    %v1083 = vld [vmem:[#allocation7 + $0x30] sm:$0xff]
    %v1084 = vld [vmem:[#allocation7 + $0x38] sm:$0xff]
    %v1085 = vld [vmem:[#allocation7 + $0x40] sm:$0xff]
    %v1086 = vld [vmem:[#allocation7 + $0x48] sm:$0xff]
    %v1087 = vld [vmem:[#allocation7 + $0x50] sm:$0xff]
    %v1088 = vld [vmem:[#allocation7 + $0x58] sm:$0xff]
    %v1089 = vld [vmem:[%s5] sm:$0x1]
    %v1091 = vlaneseq
    %v1092 = vshrl.u32 %v1091, 7
    %v1093 = vsub.s32 0, %v1092
    %v1094 = vrot.slane %v1089, %v1093
    %vm1096 = vcmask 785408
    %v1098 = vsel %vm1096, %v1075, 0
    %v1101 = vsel %vm1096, %v1076, 0
    %1103 = vmatprep.subr.mxu0 0.0
    %1104 = vmatpush1.msra.mxu0 %v1077
    %1105 = vmatprep.subr.mxu0 0.0
    %1106 = vmatpush1.msra.mxu0 %v1078
    %1107 = vmatprep.subr.mxu0 0.0
    %1108 = vmatpush1.msra.mxu0 %v1079
    %1109 = vmatprep.subr.mxu0 0.0
    %1110 = vmatpush1.msra.mxu0 %v1080
    %1111 = vmatprep.subr.mxu0 0.0
    %1112 = vmatpush1.msra.mxu0 %v1081
    %1113 = vmatprep.subr.mxu0 0.0
    %1114 = vmatpush1.msra.mxu0 %v1082
    %1115 = vmatprep.subr.mxu0 0.0
    %1116 = vmatpush1.msra.mxu0 %v1083
    %1117 = vmatprep.subr.mxu0 0.0
    %1118 = vmatpush1.msra.mxu0 %v1084
    %1119 = vmatprep.subr.mxu0 0.0
    %1120 = vmatpush1.msra.mxu0 %v1085
    %1121 = vmatprep.subr.mxu0 0.0
    %1122 = vmatpush1.msra.mxu0 %v1086
    %1123 = vmatprep.subr.mxu0 0.0
    %1124 = vmatpush1.msra.mxu0 %v1087
    %1125 = vmatprep.subr.mxu0 0.0
    %1126 = vmatpush1.msra.mxu0 %v1088
    %1127 = vmatprep.subr.mxu0 0.0
    %1128 = vmatpush1.msra.mxu0 0.0
    %1129 = vmatprep.subr.mxu0 0.0
    %1130 = vmatpush1.msra.mxu0 0.0
    %1131 = vmatprep.subr.mxu0 0.0
    %1132 = vmatpush1.msra.mxu0 0.0
    %1133 = vmatprep.subr.mxu0 0.0
    %1134 = vmatpush1.msra.mxu0 0.0
    %1135 = vmatprep.subr.mxu0 0.0
    %1136 = vmatpush1.msra.mxu0 0.0
    %1137 = vmatprep.subr.mxu0 0.0
    %1138 = vmatpush1.msra.mxu0 0.0
    %1139 = vmatprep.subr.mxu0 0.0
    %1140 = vmatpush1.msra.mxu0 0.0
    %1141 = vmatprep.subr.mxu0 0.0
    %1142 = vmatpush1.msra.mxu0 0.0
    %1143 = vmatprep.subr.mxu0 0.0
    %1144 = vmatpush1.msra.mxu0 0.0
    %1145 = vmatprep.subr.mxu0 0.0
    %1146 = vmatpush1.msra.mxu0 0.0
    %1147 = vmatprep.subr.mxu0 0.0
    %1148 = vmatpush1.msra.mxu0 0.0
    %1149 = vmatprep.subr.mxu0 0.0
    %1150 = vmatpush1.msra.mxu0 0.0
    %1151 = vmatprep.subr.mxu0 0.0
    %1152 = vmatpush1.msra.mxu0 0.0
    %1153 = vmatprep.subr.mxu0 0.0
    %1154 = vmatpush1.msra.mxu0 0.0
    %1155 = vmatprep.subr.mxu0 0.0
    %1156 = vmatpush1.msra.mxu0 0.0
    %1157 = vmatprep.subr.mxu0 0.0
    %1158 = vmatpush1.msra.mxu0 0.0
    %1159 = vmatprep.subr.mxu0 0.0
    %1160 = vmatpush1.msra.mxu0 0.0
    %1161 = vmatprep.subr.mxu0 0.0
    %1162 = vmatpush1.msra.mxu0 0.0
    %1163 = vmatprep.subr.mxu0 0.0
    %1164 = vmatpush1.msra.mxu0 0.0
    %1165 = vmatprep.subr.mxu0 0.0
    %1166 = vmatpush1.msra.mxu0 0.0
    %1167 = vmatprep.mubr.f32.mxu0 0.0
    %1168 = vmatmul.mubr.f32.gmra.mrb[0].mxu0 %v1098
    %v1169 = vpop.f32.mrb[0].mxu0
    %v1170 = vadd.f32 %v1094, %v1169
    %v1171 = vpop.f32.mrb[0].mxu0
    %1172 = vmatprep.mubr.f32.mxu0 0.0
    %1173 = vmatmul.mubr.f32.gmra.mrb[0].mxu0 %v1101
    %v1174 = vpop.f32.mrb[0].mxu0
    %v1175 = vadd.f32 %v1094, %v1174
    %v1176 = vpop.f32.mrb[0].mxu0
    %1177 = vdwg.mxu0
    %v1178 = vmax.f32 %v1170, 0.0
    %v1179 = vmax.f32 %v1175, 0.0
    %1180 = vst.msk [vmem:[#allocation3 + $0x2] sm:$0xff] %vm1074, %v1178
    %1181 = vst.msk [vmem:[#allocation3 + $0xa] sm:$0xff] %vm1074, %v1179
    %v1182 = vld [vmem:[#allocation3] sm:$0xff]
    %v1183 = vld [vmem:[#allocation3 + $0x8] sm:$0xff]
    %v1184 = vld [vmem:[#allocation3 + $0x2] sm:$0xff]
    %v1185 = vld [vmem:[#allocation3 + $0xa] sm:$0xff]
    %v1186 = vld [vmem:[#allocation3 + $0x4] sm:$0xff]
    %v1187 = vld [vmem:[#allocation3 + $0xc] sm:$0xff]
    %1190 = vrot.lane.b32.xlu0 %v1184, 64
    %v1191 = vpop.permute.xlu0 %1190
    %1192 = vrot.lane.b32.xlu0 %v1185, 64
    %v1193 = vpop.permute.xlu0 %1192
    %v1196 = vsel %vm1074, %v1182, %v1191
    %v1197 = vsel %vm1074, %v1183, %v1193
    %v1198 = vld [vmem:[#allocation9] sm:$0xff]
    %v1199 = vld [vmem:[#allocation9 + $0x8] sm:$0xff]
    %v1200 = vld [vmem:[#allocation9 + $0x10] sm:$0xff]
    %v1201 = vld [vmem:[#allocation9 + $0x18] sm:$0xff]
    %v1202 = vld [vmem:[#allocation9 + $0x20] sm:$0xff]
    %v1203 = vld [vmem:[#allocation9 + $0x28] sm:$0xff]
    %v1204 = vld [vmem:[#allocation9 + $0x30] sm:$0xff]
    %v1205 = vld [vmem:[#allocation9 + $0x38] sm:$0xff]
    %v1206 = vld [vmem:[#allocation9 + $0x40] sm:$0xff]
    %v1207 = vld [vmem:[#allocation9 + $0x48] sm:$0xff]
    %v1208 = vld [vmem:[#allocation9 + $0x50] sm:$0xff]
    %v1209 = vld [vmem:[#allocation9 + $0x58] sm:$0xff]
    %v1210 = vld [vmem:[#allocation9 + $0x60] sm:$0xff]
    %v1211 = vld [vmem:[#allocation9 + $0x68] sm:$0xff]
    %v1212 = vld [vmem:[#allocation9 + $0x70] sm:$0xff]
    %v1213 = vld [vmem:[#allocation9 + $0x78] sm:$0xff]
    %v1214 = vld [vmem:[#allocation9 + $0x80] sm:$0xff]
    %v1215 = vld [vmem:[#allocation9 + $0x88] sm:$0xff]
    %v1216 = vld [vmem:[#allocation9 + $0x90] sm:$0xff]
    %v1217 = vld [vmem:[#allocation9 + $0x98] sm:$0xff]
    %v1218 = vld [vmem:[#allocation9 + $0xa0] sm:$0xff]
    %v1219 = vld [vmem:[#allocation9 + $0xa8] sm:$0xff]
    %v1220 = vld [vmem:[#allocation9 + $0xb0] sm:$0xff]
    %v1221 = vld [vmem:[#allocation9 + $0xb8] sm:$0xff]
    %v1222 = vld [vmem:[%s7] sm:$0x1]
    %v1224 = vlaneseq
    %v1225 = vshrl.u32 %v1224, 7
    %v1226 = vsub.s32 0, %v1225
    %v1227 = vrot.slane %v1222, %v1226
    %v1230 = vsel %vm1074, %v1186, 0
    %v1233 = vsel %vm1074, %v1187, 0
    %1235 = vmatprep.subr.mxu0 0.0
    %1236 = vmatpush1.msra.mxu0 %v1198
    %1237 = vmatprep.subr.mxu0 0.0
    %1238 = vmatpush1.msra.mxu0 %v1199
    %1239 = vmatprep.subr.mxu0 0.0
    %1240 = vmatpush1.msra.mxu0 %v1200
    %1241 = vmatprep.subr.mxu0 0.0
    %1242 = vmatpush1.msra.mxu0 %v1201
    %1243 = vmatprep.subr.mxu0 0.0
    %1244 = vmatpush1.msra.mxu0 %v1202
    %1245 = vmatprep.subr.mxu0 0.0
    %1246 = vmatpush1.msra.mxu0 %v1203
    %1247 = vmatprep.subr.mxu0 0.0
    %1248 = vmatpush1.msra.mxu0 %v1204
    %1249 = vmatprep.subr.mxu0 0.0
    %1250 = vmatpush1.msra.mxu0 %v1205
    %1251 = vmatprep.subr.mxu0 0.0
    %1252 = vmatpush1.msra.mxu0 %v1206
    %1253 = vmatprep.subr.mxu0 0.0
    %1254 = vmatpush1.msra.mxu0 %v1207
    %1255 = vmatprep.subr.mxu0 0.0
    %1256 = vmatpush1.msra.mxu0 %v1208
    %1257 = vmatprep.subr.mxu0 0.0
    %1258 = vmatpush1.msra.mxu0 %v1209
    %1259 = vmatprep.subr.mxu0 0.0
    %1260 = vmatpush1.msra.mxu0 %v1210
    %1261 = vmatprep.subr.mxu0 0.0
    %1262 = vmatpush1.msra.mxu0 %v1211
    %1263 = vmatprep.subr.mxu0 0.0
    %1264 = vmatpush1.msra.mxu0 %v1212
    %1265 = vmatprep.subr.mxu0 0.0
    %1266 = vmatpush1.msra.mxu0 %v1213
    %1267 = vmatprep.subr.mxu0 0.0
    %1268 = vmatpush1.msra.mxu0 %v1214
    %1269 = vmatprep.subr.mxu0 0.0
    %1270 = vmatpush1.msra.mxu0 %v1215
    %1271 = vmatprep.subr.mxu0 0.0
    %1272 = vmatpush1.msra.mxu0 %v1216
    %1273 = vmatprep.subr.mxu0 0.0
    %1274 = vmatpush1.msra.mxu0 %v1217
    %1275 = vmatprep.subr.mxu0 0.0
    %1276 = vmatpush1.msra.mxu0 %v1218
    %1277 = vmatprep.subr.mxu0 0.0
    %1278 = vmatpush1.msra.mxu0 %v1219
    %1279 = vmatprep.subr.mxu0 0.0
    %1280 = vmatpush1.msra.mxu0 %v1220
    %1281 = vmatprep.subr.mxu0 0.0
    %1282 = vmatpush1.msra.mxu0 %v1221
    %1283 = vmatprep.subr.mxu0 0.0
    %1284 = vmatpush1.msra.mxu0 0.0
    %1285 = vmatprep.subr.mxu0 0.0
    %1286 = vmatpush1.msra.mxu0 0.0
    %1287 = vmatprep.subr.mxu0 0.0
    %1288 = vmatpush1.msra.mxu0 0.0
    %1289 = vmatprep.subr.mxu0 0.0
    %1290 = vmatpush1.msra.mxu0 0.0
    %1291 = vmatprep.subr.mxu0 0.0
    %1292 = vmatpush1.msra.mxu0 0.0
    %1293 = vmatprep.subr.mxu0 0.0
    %1294 = vmatpush1.msra.mxu0 0.0
    %1295 = vmatprep.subr.mxu0 0.0
    %1296 = vmatpush1.msra.mxu0 0.0
    %1297 = vmatprep.subr.mxu0 0.0
    %1298 = vmatpush1.msra.mxu0 0.0
    %1299 = vmatprep.mubr.f32.mxu0 %v1230
    %1300 = vmatmul.mubr.f32.gmra.mrb[0].mxu0 %v1196
    %v1301 = vpop.f32.mrb[0].mxu0
    %v1302 = vadd.f32 %v1227, %v1301
    %v1303 = vpop.f32.mrb[0].mxu0
    %1304 = vmatprep.mubr.f32.mxu0 %v1233
    %1305 = vmatmul.mubr.f32.gmra.mrb[0].mxu0 %v1197
    %v1306 = vpop.f32.mrb[0].mxu0
    %v1307 = vadd.f32 %v1227, %v1306
    %v1308 = vpop.f32.mrb[0].mxu0
    %1309 = vdwg.mxu0
    %1310 = vxpose.xlu0.b32.start [1/16] %v1302, 128
    %1311 = vxpose.xlu0.b32.cont [2/16] %v1307, 128
    %1312 = vxpose.xlu0.b32.cont [3/16] 0.0, 128
    %1313 = vxpose.xlu0.b32.cont [4/16] 0.0, 128
    %1314 = vxpose.xlu0.b32.cont [5/16] 0.0, 128
    %1315 = vxpose.xlu0.b32.cont [6/16] 0.0, 128
    %1316 = vxpose.xlu0.b32.cont [7/16] 0.0, 128
    %1317 = vxpose.xlu0.b32.cont [8/16] 0.0, 128
    %1318 = vxpose.xlu0.b32.cont [9/16] 0.0, 128
    %1319 = vxpose.xlu0.b32.cont [10/16] 0.0, 128
    %1320 = vxpose.xlu0.b32.cont [11/16] 0.0, 128
    %1321 = vxpose.xlu0.b32.cont [12/16] 0.0, 128
    %1322 = vxpose.xlu0.b32.cont [13/16] 0.0, 128
    %1323 = vxpose.xlu0.b32.cont [14/16] 0.0, 128
    %1324 = vxpose.xlu0.b32.cont [15/16] 0.0, 128
    %1325 = vxpose.xlu0.b32.end [16/16] 0.0, 128
    %v1326 = vpop.trf.xlu0
    %v1327 = vpop.trf.xlu0
    %v1328 = vpop.trf.xlu0
    %v1329 = vpop.trf.xlu0
    %v1330 = vpop.trf.xlu0
    %v1331 = vpop.trf.xlu0
    %v1332 = vpop.trf.xlu0
    %v1333 = vpop.trf.xlu0
    %v1334 = vpop.trf.xlu0
    %v1335 = vpop.trf.xlu0
    %v1336 = vpop.trf.xlu0
    %v1337 = vpop.trf.xlu0
    %v1338 = vpop.trf.xlu0
    %v1339 = vpop.trf.xlu0
    %v1340 = vpop.trf.xlu0
    %v1341 = vpop.trf.xlu0
    %v1342 = vlaneseq
    %v1343 = vshrl.u32 %v1342, 7
    %v1344 = vsub.s32 0, %v1343
    %v1345 = vrot.slane %v1326, %v1344
    %v1346 = vlaneseq
    %v1347 = vshrl.u32 %v1346, 7
    %v1348 = vsub.s32 1, %v1347
    %v1349 = vrot.slane %v1326, %v1348
    %vm1350 = vcmask 1041408
    %v1351 = vsel %vm1350, %v1345, %v1349
    %v1352 = vlaneseq
    %v1353 = vshrl.u32 %v1352, 7
    %vm1354 = vcmp.lt.s32.totalorder %v1353, 0
    %v1355 = vsub.s32 0, %v1353
    %v1356 = vsel %vm1354, %v1355, %v1353
    %v1357 = vshrl.u32 %v1356, 1
    %v1358 = vand.u32 %v1356, 1
    %v1359 = vsub.s32 0, %v1358
    %v1360 = vsel %vm1354, %v1359, %v1358
    %vm1361 = vcmp.ne.s32.totalorder %v1360, 0
    %vm1362 = vcmp.lt.s32.totalorder %v1360, 0
    %vm1363 = vmand %vm1362, %vm1361
    %v1364 = vadd.s32 %v1360, 2
    %v1365 = vsel %vm1363, %v1364, %v1360
    %v1366 = vlaneseq
    %v1367 = vand.u32 %v1366, 127
    %vm1368 = vcmp.lt.s32.totalorder %v1367, 0
    %v1369 = vsub.s32 0, %v1367
    %v1370 = vsel %vm1368, %v1369, %v1367
    %v1371 = vshrl.u32 %v1370, 1
    %v1372 = vand.u32 %v1370, 1
    %v1373 = vsub.s32 0, %v1372
    %v1374 = vsel %vm1368, %v1373, %v1372
    %vm1375 = vcmp.ne.s32.totalorder %v1374, 0
    %vm1376 = vcmp.lt.s32.totalorder %v1374, 0
    %vm1377 = vmand %vm1376, %vm1375
    %v1378 = vadd.s32 %v1374, 2
    %v1379 = vsel %vm1377, %v1378, %v1374
    %vm1380 = vcmp.eq.s32.totalorder %v1365, %v1379
    %v1381 = vsel %vm1380, %v1351, -inf
    %vm1382 = vcmask 125952
    %v1383 = vsel %vm1382, %v1381, -inf
    %1384 = vmax.xlane.f32.xlu0 %v1383
    %v1385 = vpop.xlane.xlu0 %1384
    %v1386 = vsub.f32 %v1381, %v1385
    %v1387 = vmul.f32 %v1386, 1.442695
    %v1388 = vpow.pop %v1387
    %v1389 = vsel %vm1382, %v1388, 0.0
    %1390 = vadd.xlane.f32.xlu0 %v1389
    %v1391 = vpop.xlane.xlu0 %1390
    %v1392 = vrcp.pop %v1391
    %v1393 = vmul.f32 1.0, %v1392
    %v1394 = vmul.f32 %v1388, %v1393
    %v1395 = vld [vmem:[#allocation2 + $0x2] sm:$0xff]
    %v1396 = vld [vmem:[#allocation2 + $0xa] sm:$0xff]
    %vm1397 = vcmask 130048
    %v1399 = vsel %vm1397, %v1394, 0
    %1401 = vmatprep.subr.mxu0 0.0
    %1402 = vmatpush1.msra.mxu0 %v1395
    %1403 = vmatprep.subr.mxu0 0.0
    %1404 = vmatpush1.msra.mxu0 %v1396
    %1405 = vmatprep.subr.mxu0 0.0
    %1406 = vmatpush1.msra.mxu0 0.0
    %1407 = vmatprep.subr.mxu0 0.0
    %1408 = vmatpush1.msra.mxu0 0.0
    %1409 = vmatprep.subr.mxu0 0.0
    %1410 = vmatpush1.msra.mxu0 0.0
    %1411 = vmatprep.subr.mxu0 0.0
    %1412 = vmatpush1.msra.mxu0 0.0
    %1413 = vmatprep.subr.mxu0 0.0
    %1414 = vmatpush1.msra.mxu0 0.0
    %1415 = vmatprep.subr.mxu0 0.0
    %1416 = vmatpush1.msra.mxu0 0.0
    %1417 = vmatprep.subr.mxu0 0.0
    %1418 = vmatpush1.msra.mxu0 0.0
    %1419 = vmatprep.subr.mxu0 0.0
    %1420 = vmatpush1.msra.mxu0 0.0
    %1421 = vmatprep.subr.mxu0 0.0
    %1422 = vmatpush1.msra.mxu0 0.0
    %1423 = vmatprep.subr.mxu0 0.0
    %1424 = vmatpush1.msra.mxu0 0.0
    %1425 = vmatprep.subr.mxu0 0.0
    %1426 = vmatpush1.msra.mxu0 0.0
    %1427 = vmatprep.subr.mxu0 0.0
    %1428 = vmatpush1.msra.mxu0 0.0
    %1429 = vmatprep.subr.mxu0 0.0
    %1430 = vmatpush1.msra.mxu0 0.0
    %1431 = vmatprep.subr.mxu0 0.0
    %1432 = vmatpush1.msra.mxu0 0.0
    %1433 = vmatprep.subr.mxu0 0.0
    %1434 = vmatpush1.msra.mxu0 0.0
    %1435 = vmatprep.subr.mxu0 0.0
    %1436 = vmatpush1.msra.mxu0 0.0
    %1437 = vmatprep.subr.mxu0 0.0
    %1438 = vmatpush1.msra.mxu0 0.0
    %1439 = vmatprep.subr.mxu0 0.0
    %1440 = vmatpush1.msra.mxu0 0.0
    %1441 = vmatprep.subr.mxu0 0.0
    %1442 = vmatpush1.msra.mxu0 0.0
    %1443 = vmatprep.subr.mxu0 0.0
    %1444 = vmatpush1.msra.mxu0 0.0
    %1445 = vmatprep.subr.mxu0 0.0
    %1446 = vmatpush1.msra.mxu0 0.0
    %1447 = vmatprep.subr.mxu0 0.0
    %1448 = vmatpush1.msra.mxu0 0.0
    %1449 = vmatprep.subr.mxu0 0.0
    %1450 = vmatpush1.msra.mxu0 0.0
    %1451 = vmatprep.subr.mxu0 0.0
    %1452 = vmatpush1.msra.mxu0 0.0
    %1453 = vmatprep.subr.mxu0 0.0
    %1454 = vmatpush1.msra.mxu0 0.0
    %1455 = vmatprep.subr.mxu0 0.0
    %1456 = vmatpush1.msra.mxu0 0.0
    %1457 = vmatprep.subr.mxu0 0.0
    %1458 = vmatpush1.msra.mxu0 0.0
    %1459 = vmatprep.subr.mxu0 0.0
    %1460 = vmatpush1.msra.mxu0 0.0
    %1461 = vmatprep.subr.mxu0 0.0
    %1462 = vmatpush1.msra.mxu0 0.0
    %1463 = vmatprep.subr.mxu0 0.0
    %1464 = vmatpush1.msra.mxu0 0.0
    %1465 = vmatprep.mubr.f32.mxu0 0.0
    %1466 = vmatmul.mubr.f32.gmra.mrb[0].mxu0 %v1399
    %v1467 = vpop.f32.mrb[0].mxu0
    %v1468 = vadd.f32 0.0, %v1467
    %v1469 = vpop.f32.mrb[0].mxu0
    %1470 = vdwg.mxu0
    %v1472 = vrot.slane %v1468, 2
    %1473 = vrot.lane.b32.xlu0 %v1472, 32
    %v1474 = vpop.permute.xlu0 %1473
    %v1476 = vsel %vm90, %v1468, %v1474
    %1477 = vst.msk [vmem:[#allocation10] sm:$0x3] %vm74, %v1476
    // Predicated region
    $region46: #{a_call__.1} parent=1 // pred_check
      _
    $region47: #{a_call__.1} parent=1 // pred_check_branch
      %1479 = sbr.rel (0) target = $region49
    $region48: #{a_call__.1} parent=1 // pred_region
      %s1481 = ssub.s32 32, 32
      %1482 = vsyncadd [#allocation6], %s1481
      %s1484 = sshll.u32 [#allocation10], 4
      %s1485 = int_to_ptr.vmem [resolvable:$true] %s1484
      %1487 = dma.vmem_to_hbm [thread:$0]  %s1485, 32, %s8, [#allocation6]
    $region49: #{a_call__.1} parent=1 // pred_fallthru
      _
    // Predicated region
    $region50: #{a_call__.1} parent=1 // pred_check
      _
    $region51: #{a_call__.1} parent=1 // pred_check_branch
      %1489 = sbr.rel (0) target = $region53
    $region52: #{a_call__.1} parent=1 // pred_region
      %1490 = dma.done [#allocation6], 32
    $region53: #{a_call__.1} parent=1 // pred_fallthru
      _
    %1491 = vsyncpa [#allocation5], 1
    %1492 = vsyncpa [#allocation8], 1
    %1493 = vsyncpa [#allocation6], 1

</llo_original>
